<compile_context>
chip_gen: v6e
topology: v6e:2x2x1
jax: 0.10.0
libtpu: 0.0.40
codegen_flags: <defaults>
</compile_context>

<pallas_src>
import math

import jax
import jax.numpy as jnp
from jax import lax
from jax.experimental import pallas as pl
from jax.experimental.pallas import tpu as pltpu

# ----------------------------- config ---------------------------------------
HIDDEN = 128         # config.hidden_size (lane-aligned -> dense stores)
SEQ = 8              # sequence length of the example inputs
BATCH = 2
N_STATIC = 4         # number of static indices per subject
VOCAB_SIZE = 50      # config.vocab_size (static embedding table)
MAX_MEAS_VOCAB = 30  # max(vocab_sizes_by_measurement.values())
N_TOTAL_EMB = MAX_MEAS_VOCAB + 125
SEQ_WINDOW = 8       # config.seq_window_size
BN_EPS = 1e-5        # nn.BatchNorm1d default eps (eval mode, running stats 0/1)
LN_EPS = 1e-5        # nn.LayerNorm default eps
BN_SCALE = 1.0 / math.sqrt(1.0 + BN_EPS)
# use_addition_for_static = True, use_layer_norm = True, use_fake_feature = False
# input_dropout -> identity (eval mode)


# ----------------------------- kernel ---------------------------------------
def _input_layer_kernel(data_ref, vt_ref, static_ref, wc01_ref, pack_ref, out_ref):
    """Single-invocation kernel over the full (B, S, H) problem.

    data_ref   : (B, S, H)  data_embedding_layer output
    vt_ref     : (B, S, 2)  [:, :, 0] = dynamic_values (may be NaN), [:, :, 1] = time
    static_ref : (B, H)     mean static embedding per batch element
    wc01_ref   : (2H, H)    feature_combiner weight rows for [data | static]
    pack_ref   : (8, H)     packed small vectors:
                             row 0 wv, 1 bv, 2 (wt@Wc2), 3 (bt@Wc2 + bc),
                             4 ln_gamma, 5 ln_beta, 6-7 padding
    out_ref    : (B, S, H)
    """
    B, S, H = data_ref.shape

    pack = pack_ref[...]                 # one (8,128) tile
    wv = pack[0:1, :]
    bv = pack[1:2, :]
    tvec = pack[2:3, :]                  # folded time weight
    cvec = pack[3:4, :]                  # folded time bias + combiner bias
    gamma = pack[4:5, :]
    beta = pack[5:6, :]

    wc_data = wc01_ref[0:H, :]           # (H, H)
    wc_static = wc01_ref[H:2 * H, :]     # (H, H)

    # static path: mean static embedding -> combiner contribution, once per
    # batch element (tiny (B,H)x(H,H) dot), broadcast over seq below.
    # precision=HIGHEST kept so the f32 verification holds to 1e-4; with bf16
    # activations in production this should be dropped (v5e review note).
    static_contrib = jnp.dot(static_ref[...], wc_static,
                             preferred_element_type=jnp.float32,
                             precision=lax.Precision.HIGHEST)        # (B, H)

    # B is tiny and static -> unrolled Python loop, no grid machinery.
    for b in range(B):
        data = data_ref[b]               # (S, H)
        vt = vt_ref[b]                   # (S, 2)
        vals = vt[:, 0:1]                # (S, 1)  dynamic_values (may hold NaN)
        t = vt[:, 1:2]                   # (S, 1)

        # dynamic_values path: BatchNorm1d(1) in eval (running mean 0 / var 1,
        # gamma=1, beta=0) then Linear(1,H); replace data_embed where not NaN.
        # (val_embed is NaN where vals is NaN; the select discards those.)
        val_embed = (vals * BN_SCALE) * wv + bv                       # (S, H)
        data = jnp.where(jnp.isnan(vals), data, val_embed)

        # feature_combiner: only the data/value path needs the MXU; the static
        # and time contributions are VPU broadcast-multiply-adds.
        comb = (jnp.dot(data, wc_data,
                        preferred_element_type=jnp.float32,
                        precision=lax.Precision.HIGHEST)
                + static_contrib[b:b + 1, :]
                + t * tvec + cvec)                                    # (S, H)

        # LayerNorm over hidden
        mean = jnp.mean(comb, axis=-1, keepdims=True)
        var = jnp.mean((comb - mean) ** 2, axis=-1, keepdims=True)
        normed = (comb - mean) * lax.rsqrt(var + LN_EPS) * gamma + beta

        out_ref[b] = normed + 1e-8       # full-lane (S,128) store


def _run_kernel(data_embed, vt, static_mean, wc01, pack):
    B, S, H = data_embed.shape
    vspec = pl.BlockSpec(memory_space=pltpu.MemorySpace.VMEM)
    return pl.pallas_call(
        _input_layer_kernel,
        out_shape=jax.ShapeDtypeStruct((B, S, H), jnp.float32),
        in_specs=[vspec, vspec, vspec, vspec, vspec],
        out_specs=vspec,
    )(data_embed, vt, static_mean, wc01, pack)


# ----------------------------- glue ------------------------------------------
def _maybe_standardize(x):
    # forward() pre-step: if tensor.abs().mean() > 1 -> (x - mean)/(std + 1e-6)
    # (torch.std is unbiased; std==0 is replaced by 1e-6 before the +1e-6,
    # exactly as in the PyTorch source). NaN mean => condition False.
    m = jnp.mean(jnp.abs(x))
    mean = jnp.mean(x)
    std = jnp.std(x, ddof=1)
    std = jnp.where(std == 0, jnp.float32(1e-6), std)
    return jnp.where(m > 1.0, (x - mean) / (std + 1e-6), x)


def _fold_weights(params):
    """Weight-only algebra, done once at trace time (could be hoisted)."""
    H = HIDDEN
    wc = params["wc"]                                   # (3H, H)
    wc2 = wc[2 * H:3 * H, :]
    tvec = jnp.dot(params["wt"], wc2, precision=lax.Precision.HIGHEST)   # (1,H)
    cvec = jnp.dot(params["bt"], wc2, precision=lax.Precision.HIGHEST) + params["bc"]
    pack = jnp.concatenate(
        [params["wv"], params["bv"], tvec, cvec,
         params["ln_g"], params["ln_b"], jnp.zeros((2, H), jnp.float32)],
        axis=0)                                         # (8, H) = one tile
    return wc[0:2 * H, :], pack


def input_layer_forward(params, input_features):
    dyn_idx = input_features["dynamic_indices"].astype(jnp.int32)          # (B, S)
    dyn_values = _maybe_standardize(
        input_features["dynamic_values"].astype(jnp.float32))              # (B, S)
    time = _maybe_standardize(input_features["time"].astype(jnp.float32))  # (B, S)
    static_idx = input_features["static_indices"].astype(jnp.int32)        # (B, Ns)

    # TODO(synk): DataEmbeddingLayer is not defined in the provided source; it
    # is approximated by a categorical embedding lookup of dynamic_indices.
    # (Gather kept in XLA: fusing it in-kernel is a marginal win at S=8.)
    data_embed = jnp.take(params["data_emb_table"], dyn_idx, axis=0)       # (B,S,H)

    # static_embedding + mean over static dim (use_addition_for_static=True)
    static_embed = jnp.take(params["static_emb_table"], static_idx, axis=0)
    static_mean = jnp.mean(static_embed, axis=1)                            # (B, H)

    vt = jnp.stack([dyn_values, time], axis=-1)                             # (B,S,2)

    wc01, pack = _fold_weights(params)
    combined = _run_kernel(data_embed.astype(jnp.float32), vt,
                           static_mean.astype(jnp.float32), wc01, pack)

    # pad / truncate along seq to seq_window_size (pad after +1e-8, like torch)
    s = combined.shape[1]
    if s < SEQ_WINDOW:
        combined = jnp.pad(combined, ((0, 0), (0, SEQ_WINDOW - s), (0, 0)))
    elif s > SEQ_WINDOW:
        combined = combined[:, :SEQ_WINDOW, :]

    # embedding_dropout: identity in eval mode
    return combined


# ----------------------------- pure-JAX reference ----------------------------
def reference_forward(params, input_features):
    # Mirrors the original torch math (concat + single Linear(3H,H)), used to
    # validate the in-kernel static/time algebraic fold.
    dyn_idx = input_features["dynamic_indices"].astype(jnp.int32)
    dyn_values = _maybe_standardize(input_features["dynamic_values"].astype(jnp.float32))
    time = _maybe_standardize(input_features["time"].astype(jnp.float32))
    static_idx = input_features["static_indices"].astype(jnp.int32)

    data_embed = jnp.take(params["data_emb_table"], dyn_idx, axis=0)
    static_embed = jnp.mean(jnp.take(params["static_emb_table"], static_idx, axis=0), axis=1)
    static_embed = jnp.broadcast_to(static_embed[:, None, :], data_embed.shape)

    v_norm = dyn_values / jnp.sqrt(1.0 + BN_EPS)
    val_embed = v_norm[..., None] * params["wv"][0] + params["bv"][0]
    mask = ~jnp.isnan(dyn_values)
    data_embed = jnp.where(mask[..., None], val_embed, data_embed)

    time_embed = time[..., None] * params["wt"][0] + params["bt"][0]

    cat = jnp.concatenate([data_embed, static_embed, time_embed], axis=-1)
    comb = jnp.einsum("bsk,kh->bsh", cat, params["wc"],
                      precision=lax.Precision.HIGHEST) + params["bc"][0]

    mean = jnp.mean(comb, axis=-1, keepdims=True)
    var = jnp.mean((comb - mean) ** 2, axis=-1, keepdims=True)
    out = (comb - mean) / jnp.sqrt(var + LN_EPS) * params["ln_g"][0] + params["ln_b"][0]
    return out + 1e-8


# ----------------------------- setup ------------------------------------------
def make_params(key):
    ks = jax.random.split(key, 8)
    H = HIDDEN
    return {
        "data_emb_table": 0.1 * jax.random.normal(ks[0], (N_TOTAL_EMB, H), jnp.float32),
        "static_emb_table": 0.1 * jax.random.normal(ks[1], (VOCAB_SIZE, H), jnp.float32),
        "wv": 0.2 * jax.random.normal(ks[2], (1, H), jnp.float32),   # Linear(1,H).weight.T
        "bv": 0.05 * jax.random.normal(ks[3], (1, H), jnp.float32),
        "wt": 0.2 * jax.random.normal(ks[4], (1, H), jnp.float32),
        "bt": 0.05 * jax.random.normal(ks[5], (1, H), jnp.float32),
        "wc": (1.0 / jnp.sqrt(3.0 * H)) * jax.random.normal(ks[6], (3 * H, H), jnp.float32),
        "bc": 0.01 * jax.random.normal(ks[7], (1, H), jnp.float32),
        "ln_g": jnp.ones((1, H), jnp.float32),
        "ln_b": jnp.zeros((1, H), jnp.float32),
    }


if __name__ == "__main__":
    key = jax.random.PRNGKey(0)
    kp, k1, k2, k3, k4, k5 = jax.random.split(key, 6)
    params = make_params(kp)

    dynamic_indices = jax.random.randint(k1, (BATCH, SEQ), 1, N_TOTAL_EMB)
    dyn_vals = 0.5 * jax.random.normal(k2, (BATCH, SEQ), jnp.float32)
    nan_mask = jax.random.bernoulli(k3, 0.3, (BATCH, SEQ))
    dyn_vals = jnp.where(nan_mask, jnp.nan, dyn_vals)              # some missing values
    time = jnp.cumsum(5.0 * jax.random.uniform(k4, (BATCH, SEQ)), axis=1)  # triggers standardize
    static_indices = jax.random.randint(k5, (BATCH, N_STATIC), 0, VOCAB_SIZE)

    input_features = {
        "dynamic_indices": dynamic_indices,
        "dynamic_values": dyn_vals,
        "time": time,
        "static_indices": static_indices,
    }

    out = jax.block_until_ready(input_layer_forward(params, input_features))
    ref = jax.block_until_ready(reference_forward(params, input_features))

    assert out.shape == (BATCH, SEQ_WINDOW, HIDDEN), out.shape
    assert jnp.allclose(out, ref, rtol=1e-4, atol=1e-4), float(jnp.max(jnp.abs(out - ref)))
    print("KERNEL_OK")
</pallas_src>

<mosaic_0001>
module attributes {stable_mosaic.version = 11 : i64} {
  func.func @_input_layer_kernel(%arg0: memref<2x8x128xf32, #tpu.memory_space<vmem>>, %arg1: memref<2x8x2xf32, #tpu.memory_space<vmem>>, %arg2: memref<2x128xf32, #tpu.memory_space<vmem>>, %arg3: memref<256x128xf32, #tpu.memory_space<vmem>>, %arg4: memref<8x128xf32, #tpu.memory_space<vmem>>, %arg5: memref<2x8x128xf32, #tpu.memory_space<vmem>>) attributes {dimension_semantics = [], scalar_prefetch = 0 : i64, scratch_operands = 0 : i64, tpu.core_type = #tpu.core_type<tc>} {
    %c0 = arith.constant 0 : index
    %c0_0 = arith.constant 0 : index
    %0 = vector.load %arg4[%c0, %c0_0] : memref<8x128xf32, #tpu.memory_space<vmem>>, vector<8x128xf32>
    %1 = vector.extract_strided_slice %0 {offsets = [0, 0], sizes = [1, 128], strides = [1, 1]} : vector<8x128xf32> to vector<1x128xf32>
    %2 = vector.extract_strided_slice %0 {offsets = [1, 0], sizes = [1, 128], strides = [1, 1]} : vector<8x128xf32> to vector<1x128xf32>
    %3 = vector.extract_strided_slice %0 {offsets = [2, 0], sizes = [1, 128], strides = [1, 1]} : vector<8x128xf32> to vector<1x128xf32>
    %4 = vector.extract_strided_slice %0 {offsets = [3, 0], sizes = [1, 128], strides = [1, 1]} : vector<8x128xf32> to vector<1x128xf32>
    %5 = vector.extract_strided_slice %0 {offsets = [4, 0], sizes = [1, 128], strides = [1, 1]} : vector<8x128xf32> to vector<1x128xf32>
    %6 = vector.extract_strided_slice %0 {offsets = [5, 0], sizes = [1, 128], strides = [1, 1]} : vector<8x128xf32> to vector<1x128xf32>
    %c0_1 = arith.constant 0 : index
    %c0_2 = arith.constant 0 : index
    %7 = vector.load %arg3[%c0_1, %c0_2] : memref<256x128xf32, #tpu.memory_space<vmem>>, vector<128x128xf32>
    %c128 = arith.constant 128 : index
    %c0_3 = arith.constant 0 : index
    %8 = vector.load %arg3[%c128, %c0_3] : memref<256x128xf32, #tpu.memory_space<vmem>>, vector<128x128xf32>
    %c0_4 = arith.constant 0 : index
    %c0_5 = arith.constant 0 : index
    %9 = vector.load %arg2[%c0_4, %c0_5] : memref<2x128xf32, #tpu.memory_space<vmem>>, vector<2x128xf32>
    %cst = arith.constant dense<0.000000e+00> : vector<2x128xf32>
    %10 = tpu.matmul %9, %8, %cst {dimension_numbers = #tpu.dot_dimension_numbers<[1], [0], [0], [1], [0, 0, 1, 1], [], []>, precision = #tpu.contract_precision<fp32>} : vector<2x128xf32>, vector<128x128xf32>, vector<2x128xf32> -> vector<2x128xf32>
    %c0_6 = arith.constant 0 : index
    %c0_7 = arith.constant 0 : index
    %c0_8 = arith.constant 0 : index
    %11 = vector.load %arg0[%c0_6, %c0_7, %c0_8] : memref<2x8x128xf32, #tpu.memory_space<vmem>>, vector<1x8x128xf32>
    %12 = vector.shape_cast %11 : vector<1x8x128xf32> to vector<8x128xf32>
    %c0_9 = arith.constant 0 : index
    %c0_10 = arith.constant 0 : index
    %c0_11 = arith.constant 0 : index
    %13 = vector.load %arg1[%c0_9, %c0_10, %c0_11] : memref<2x8x2xf32, #tpu.memory_space<vmem>>, vector<1x8x2xf32>
    %14 = vector.shape_cast %13 : vector<1x8x2xf32> to vector<8x2xf32>
    %15 = vector.extract_strided_slice %14 {offsets = [0, 0], sizes = [8, 1], strides = [1, 1]} : vector<8x2xf32> to vector<8x1xf32>
    %16 = vector.extract_strided_slice %14 {offsets = [0, 1], sizes = [8, 1], strides = [1, 1]} : vector<8x2xf32> to vector<8x1xf32>
    %cst_12 = arith.constant 0.999994993 : f32
    %17 = vector.broadcast %cst_12 : f32 to vector<8x1xf32>
    %18 = arith.mulf %15, %17 : vector<8x1xf32>
    %19 = vector.broadcast %18 : vector<8x1xf32> to vector<8x128xf32>
    %20 = vector.broadcast %1 : vector<1x128xf32> to vector<8x128xf32>
    %21 = arith.mulf %19, %20 : vector<8x128xf32>
    %22 = vector.broadcast %2 : vector<1x128xf32> to vector<8x128xf32>
    %23 = arith.addf %21, %22 : vector<8x128xf32>
    %24 = arith.cmpf one, %15, %15 : vector<8x1xf32>
    %25 = vector.shape_cast %24 : vector<8x1xi1> to vector<8x1xi1>
    %26 = vector.broadcast %25 : vector<8x1xi1> to vector<8x128xi1>
    %27 = arith.select %26, %12, %23 : vector<8x128xi1>, vector<8x128xf32>
    %cst_13 = arith.constant dense<0.000000e+00> : vector<8x128xf32>
    %28 = tpu.matmul %27, %7, %cst_13 {dimension_numbers = #tpu.dot_dimension_numbers<[1], [0], [0], [1], [0, 0, 1, 1], [], []>, precision = #tpu.contract_precision<fp32>} : vector<8x128xf32>, vector<128x128xf32>, vector<8x128xf32> -> vector<8x128xf32>
    %29 = vector.extract_strided_slice %10 {offsets = [0, 0], sizes = [1, 128], strides = [1, 1]} : vector<2x128xf32> to vector<1x128xf32>
    %30 = vector.broadcast %29 : vector<1x128xf32> to vector<8x128xf32>
    %31 = arith.addf %28, %30 : vector<8x128xf32>
    %32 = vector.broadcast %16 : vector<8x1xf32> to vector<8x128xf32>
    %33 = vector.broadcast %3 : vector<1x128xf32> to vector<8x128xf32>
    %34 = arith.mulf %32, %33 : vector<8x128xf32>
    %35 = arith.addf %31, %34 : vector<8x128xf32>
    %36 = vector.broadcast %4 : vector<1x128xf32> to vector<8x128xf32>
    %37 = arith.addf %35, %36 : vector<8x128xf32>
    %cst_14 = arith.constant dense<0.000000e+00> : vector<8xf32>
    %38 = vector.multi_reduction <add>, %37, %cst_14 [1] : vector<8x128xf32> to vector<8xf32>
    %39 = vector.shape_cast %38 : vector<8xf32> to vector<8x1xf32>
    %cst_15 = arith.constant 1.280000e+02 : f32
    %40 = vector.broadcast %cst_15 : f32 to vector<8x1xf32>
    %41 = arith.divf %39, %40 : vector<8x1xf32>
    %42 = vector.broadcast %41 : vector<8x1xf32> to vector<8x128xf32>
    %43 = arith.subf %37, %42 : vector<8x128xf32>
    %44 = arith.mulf %43, %43 : vector<8x128xf32>
    %cst_16 = arith.constant dense<0.000000e+00> : vector<8xf32>
    %45 = vector.multi_reduction <add>, %44, %cst_16 [1] : vector<8x128xf32> to vector<8xf32>
    %46 = vector.shape_cast %45 : vector<8xf32> to vector<8x1xf32>
    %cst_17 = arith.constant 1.280000e+02 : f32
    %47 = vector.broadcast %cst_17 : f32 to vector<8x1xf32>
    %48 = arith.divf %46, %47 : vector<8x1xf32>
    %49 = vector.broadcast %41 : vector<8x1xf32> to vector<8x128xf32>
    %50 = arith.subf %37, %49 : vector<8x128xf32>
    %cst_18 = arith.constant 9.99999974E-6 : f32
    %51 = vector.broadcast %cst_18 : f32 to vector<8x1xf32>
    %52 = arith.addf %48, %51 : vector<8x1xf32>
    %53 = math.rsqrt %52 : vector<8x1xf32>
    %54 = vector.broadcast %53 : vector<8x1xf32> to vector<8x128xf32>
    %55 = arith.mulf %50, %54 : vector<8x128xf32>
    %56 = vector.broadcast %5 : vector<1x128xf32> to vector<8x128xf32>
    %57 = arith.mulf %55, %56 : vector<8x128xf32>
    %58 = vector.broadcast %6 : vector<1x128xf32> to vector<8x128xf32>
    %59 = arith.addf %57, %58 : vector<8x128xf32>
    %cst_19 = arith.constant 9.99999993E-9 : f32
    %60 = vector.broadcast %cst_19 : f32 to vector<8x128xf32>
    %61 = arith.addf %59, %60 : vector<8x128xf32>
    %c0_20 = arith.constant 0 : index
    %c0_21 = arith.constant 0 : index
    %c0_22 = arith.constant 0 : index
    %62 = vector.load %arg5[%c0_20, %c0_21, %c0_22] : memref<2x8x128xf32, #tpu.memory_space<vmem>>, vector<1x8x128xf32>
    %63 = vector.shape_cast %62 : vector<1x8x128xf32> to vector<8x128xf32>
    %64 = vector.shape_cast %61 : vector<8x128xf32> to vector<1x8x128xf32>
    tpu.vector_store %arg5[%c0_20, %c0_21, %c0_22], %64 {strides = array<i32>} : memref<2x8x128xf32, #tpu.memory_space<vmem>>, vector<1x8x128xf32>,
    %c1 = arith.constant 1 : index
    %c0_23 = arith.constant 0 : index
    %c0_24 = arith.constant 0 : index
    %65 = vector.load %arg0[%c1, %c0_23, %c0_24] : memref<2x8x128xf32, #tpu.memory_space<vmem>>, vector<1x8x128xf32>
    %66 = vector.shape_cast %65 : vector<1x8x128xf32> to vector<8x128xf32>
    %c1_25 = arith.constant 1 : index
    %c0_26 = arith.constant 0 : index
    %c0_27 = arith.constant 0 : index
    %67 = vector.load %arg1[%c1_25, %c0_26, %c0_27] : memref<2x8x2xf32, #tpu.memory_space<vmem>>, vector<1x8x2xf32>
    %68 = vector.shape_cast %67 : vector<1x8x2xf32> to vector<8x2xf32>
    %69 = vector.extract_strided_slice %68 {offsets = [0, 0], sizes = [8, 1], strides = [1, 1]} : vector<8x2xf32> to vector<8x1xf32>
    %70 = vector.extract_strided_slice %68 {offsets = [0, 1], sizes = [8, 1], strides = [1, 1]} : vector<8x2xf32> to vector<8x1xf32>
    %cst_28 = arith.constant 0.999994993 : f32
    %71 = vector.broadcast %cst_28 : f32 to vector<8x1xf32>
    %72 = arith.mulf %69, %71 : vector<8x1xf32>
    %73 = vector.broadcast %72 : vector<8x1xf32> to vector<8x128xf32>
    %74 = vector.broadcast %1 : vector<1x128xf32> to vector<8x128xf32>
    %75 = arith.mulf %73, %74 : vector<8x128xf32>
    %76 = vector.broadcast %2 : vector<1x128xf32> to vector<8x128xf32>
    %77 = arith.addf %75, %76 : vector<8x128xf32>
    %78 = arith.cmpf one, %69, %69 : vector<8x1xf32>
    %79 = vector.shape_cast %78 : vector<8x1xi1> to vector<8x1xi1>
    %80 = vector.broadcast %79 : vector<8x1xi1> to vector<8x128xi1>
    %81 = arith.select %80, %66, %77 : vector<8x128xi1>, vector<8x128xf32>
    %cst_29 = arith.constant dense<0.000000e+00> : vector<8x128xf32>
    %82 = tpu.matmul %81, %7, %cst_29 {dimension_numbers = #tpu.dot_dimension_numbers<[1], [0], [0], [1], [0, 0, 1, 1], [], []>, precision = #tpu.contract_precision<fp32>} : vector<8x128xf32>, vector<128x128xf32>, vector<8x128xf32> -> vector<8x128xf32>
    %83 = vector.extract_strided_slice %10 {offsets = [1, 0], sizes = [1, 128], strides = [1, 1]} : vector<2x128xf32> to vector<1x128xf32>
    %84 = vector.broadcast %83 : vector<1x128xf32> to vector<8x128xf32>
    %85 = arith.addf %82, %84 : vector<8x128xf32>
    %86 = vector.broadcast %70 : vector<8x1xf32> to vector<8x128xf32>
    %87 = vector.broadcast %3 : vector<1x128xf32> to vector<8x128xf32>
    %88 = arith.mulf %86, %87 : vector<8x128xf32>
    %89 = arith.addf %85, %88 : vector<8x128xf32>
    %90 = vector.broadcast %4 : vector<1x128xf32> to vector<8x128xf32>
    %91 = arith.addf %89, %90 : vector<8x128xf32>
    %cst_30 = arith.constant dense<0.000000e+00> : vector<8xf32>
    %92 = vector.multi_reduction <add>, %91, %cst_30 [1] : vector<8x128xf32> to vector<8xf32>
    %93 = vector.shape_cast %92 : vector<8xf32> to vector<8x1xf32>
    %cst_31 = arith.constant 1.280000e+02 : f32
    %94 = vector.broadcast %cst_31 : f32 to vector<8x1xf32>
    %95 = arith.divf %93, %94 : vector<8x1xf32>
    %96 = vector.broadcast %95 : vector<8x1xf32> to vector<8x128xf32>
    %97 = arith.subf %91, %96 : vector<8x128xf32>
    %98 = arith.mulf %97, %97 : vector<8x128xf32>
    %cst_32 = arith.constant dense<0.000000e+00> : vector<8xf32>
    %99 = vector.multi_reduction <add>, %98, %cst_32 [1] : vector<8x128xf32> to vector<8xf32>
    %100 = vector.shape_cast %99 : vector<8xf32> to vector<8x1xf32>
    %cst_33 = arith.constant 1.280000e+02 : f32
    %101 = vector.broadcast %cst_33 : f32 to vector<8x1xf32>
    %102 = arith.divf %100, %101 : vector<8x1xf32>
    %103 = vector.broadcast %95 : vector<8x1xf32> to vector<8x128xf32>
    %104 = arith.subf %91, %103 : vector<8x128xf32>
    %cst_34 = arith.constant 9.99999974E-6 : f32
    %105 = vector.broadcast %cst_34 : f32 to vector<8x1xf32>
    %106 = arith.addf %102, %105 : vector<8x1xf32>
    %107 = math.rsqrt %106 : vector<8x1xf32>
    %108 = vector.broadcast %107 : vector<8x1xf32> to vector<8x128xf32>
    %109 = arith.mulf %104, %108 : vector<8x128xf32>
    %110 = vector.broadcast %5 : vector<1x128xf32> to vector<8x128xf32>
    %111 = arith.mulf %109, %110 : vector<8x128xf32>
    %112 = vector.broadcast %6 : vector<1x128xf32> to vector<8x128xf32>
    %113 = arith.addf %111, %112 : vector<8x128xf32>
    %cst_35 = arith.constant 9.99999993E-9 : f32
    %114 = vector.broadcast %cst_35 : f32 to vector<8x128xf32>
    %115 = arith.addf %113, %114 : vector<8x128xf32>
    %c1_36 = arith.constant 1 : index
    %c0_37 = arith.constant 0 : index
    %c0_38 = arith.constant 0 : index
    %116 = vector.load %arg5[%c1_36, %c0_37, %c0_38] : memref<2x8x128xf32, #tpu.memory_space<vmem>>, vector<1x8x128xf32>
    %117 = vector.shape_cast %116 : vector<1x8x128xf32> to vector<8x128xf32>
    %118 = vector.shape_cast %115 : vector<8x128xf32> to vector<1x8x128xf32>
    tpu.vector_store %arg5[%c1_36, %c0_37, %c0_38], %118 {strides = array<i32>} : memref<2x8x128xf32, #tpu.memory_space<vmem>>, vector<1x8x128xf32>,
    return
  }
}

</mosaic_0001>

<llo_original>
// kernel: tpu_custom_call.1
$region0: #{tpu_custom_call.1}
  #allocation0 [shape = 'u32[]', space=smem, size = 0x4, offset = 0x4, fixed_abs, tag = 'smem constant byte address 0x4 - core index']
  #allocation1 [shape = 'u32[144,128]{1,0:T(1,128)}', space=vmem, size = 0x12000, scoped, tag = 'internal scratch']
  %s0 = inlined_call_operand.vmem [shape: f32[2,8,128], index: 0, kind: input, shape index: {}]
  %s1 = inlined_call_operand.vmem [shape: f32[2,8,2], index: 1, kind: input, shape index: {}]
  %s2 = inlined_call_operand.hbm [shape: f32[2,128], index: 2, kind: input, shape index: {}]
  %s3 = inlined_call_operand.hbm [shape: f32[256,128], index: 3, kind: input, shape index: {}]
  %s4 = inlined_call_operand.vmem [shape: f32[8,128], index: 4, kind: input, shape index: {}]
  %s5 = inlined_call_operand.hbm [shape: f32[2,8,128], index: 5, kind: output, shape index: {}]
  %s6 = sld [smem:[#allocation0]]
  $region38: #{tpu_custom_call.1} parent=0
    _
  %s8 = ssub.s32 1, %s6
  %s9 = scalar_select 0, %s8, %s6
  $region1: #{tpu_custom_call.1} parent=0
    #allocation2 [shape = 'u8[1024]{0}', space=vmem, size = 0x400, scoped, tag = 'input window, operand 2, single buffered']
    #allocation3 [shape = 's32[1]{0}', space=sflag, size = 0x4, scoped, tag = 'scoped memory for tpu_custom_call.1']
    #allocation4 [shape = 's32[1]{0}', space=sflag, size = 0x4, scoped, tag = 'scoped memory for tpu_custom_call.1']
    #allocation5 [shape = 'u8[131072]{0}', space=vmem, size = 0x20000, scoped, tag = 'input window, operand 3, single buffered']
    #allocation6 [shape = 's32[1]{0}', space=sflag, size = 0x4, scoped, tag = 'scoped memory for tpu_custom_call.1']
    #allocation7 [shape = 'u8[8192]{0}', space=vmem, size = 0x2000, scoped, tag = 'output window, operand 0, single buffered']
    %10 = vsyncpa [#allocation3], 0
    %11 = vsyncpa [#allocation6], 0
    %12 = vsyncpa [#allocation4], 0
    // Predicated region
    $region2: #{tpu_custom_call.1} parent=1 // pred_check
      _
    $region3: #{tpu_custom_call.1} parent=1 // pred_check_branch
      %14 = sbr.rel (0) target = $region5
    $region4: #{tpu_custom_call.1} parent=1 // pred_region
      _
    $region5: #{tpu_custom_call.1} parent=1 // pred_fallthru
      _
    // Predicated region
    $region6: #{tpu_custom_call.1} parent=1 // pred_check
      _
    $region7: #{tpu_custom_call.1} parent=1 // pred_check_branch
      %16 = sbr.rel (0) target = $region9
    $region8: #{tpu_custom_call.1} parent=1 // pred_region
      _
    $region9: #{tpu_custom_call.1} parent=1 // pred_fallthru
      _
    // Predicated region
    $region10: #{tpu_custom_call.1} parent=1 // pred_check
      _
    $region11: #{tpu_custom_call.1} parent=1 // pred_check_branch
      %18 = sbr.rel (0) target = $region13
    $region12: #{tpu_custom_call.1} parent=1 // pred_region
      %s20 = ssub.s32 32, 32
      %21 = vsyncadd [#allocation3], %s20
      %s23 = sshll.u32 [#allocation2], 4
      %s24 = int_to_ptr.vmem [resolvable:$true] %s23
      %26 = dma.hbm_to_vmem [thread:$0]  %s2, 32, %s24, [#allocation3]
    $region13: #{tpu_custom_call.1} parent=1 // pred_fallthru
      _
    // Predicated region
    $region14: #{tpu_custom_call.1} parent=1 // pred_check
      _
    $region15: #{tpu_custom_call.1} parent=1 // pred_check_branch
      %28 = sbr.rel (0) target = $region17
    $region16: #{tpu_custom_call.1} parent=1 // pred_region
      %s30 = ssub.s32 4096, 4096
      %31 = vsyncadd [#allocation6], %s30
      %s32 = sshll.u32 [#allocation5], 4
      %s33 = int_to_ptr.vmem [resolvable:$true] %s32
      %38 = dma.hbm_to_vmem [thread:$0]  %s3, 4096, %s33, [#allocation6], 128, 128, 8
    $region17: #{tpu_custom_call.1} parent=1 // pred_fallthru
      _
    // Predicated region
    $region18: #{tpu_custom_call.1} parent=1 // pred_check
      _
    $region19: #{tpu_custom_call.1} parent=1 // pred_check_branch
      %40 = sbr.rel (0) target = $region21
    $region20: #{tpu_custom_call.1} parent=1 // pred_region
      _
    $region21: #{tpu_custom_call.1} parent=1 // pred_fallthru
      _
    // Predicated region
    $region22: #{tpu_custom_call.1} parent=1 // pred_check
      _
    $region23: #{tpu_custom_call.1} parent=1 // pred_check_branch
      %42 = sbr.rel (0) target = $region25
    $region24: #{tpu_custom_call.1} parent=1 // pred_region
      %43 = dma.done [#allocation3], 32
    $region25: #{tpu_custom_call.1} parent=1 // pred_fallthru
      _
    // Predicated region
    $region26: #{tpu_custom_call.1} parent=1 // pred_check
      _
    $region27: #{tpu_custom_call.1} parent=1 // pred_check_branch
      %45 = sbr.rel (0) target = $region29
    $region28: #{tpu_custom_call.1} parent=1 // pred_region
      %46 = dma.done [#allocation6], 4096
    $region29: #{tpu_custom_call.1} parent=1 // pred_fallthru
      _
    %v47 = vld [vmem:[%s4] sm:$0xff]
    %v48 = vld [vmem:[#allocation5] sm:$0xff]
    %v49 = vld [vmem:[#allocation5 + $0x8] sm:$0xff]
    %v50 = vld [vmem:[#allocation5 + $0x10] sm:$0xff]
    %v51 = vld [vmem:[#allocation5 + $0x18] sm:$0xff]
    %v52 = vld [vmem:[#allocation5 + $0x20] sm:$0xff]
    %v53 = vld [vmem:[#allocation5 + $0x28] sm:$0xff]
    %v54 = vld [vmem:[#allocation5 + $0x30] sm:$0xff]
    %v55 = vld [vmem:[#allocation5 + $0x38] sm:$0xff]
    %v56 = vld [vmem:[#allocation5 + $0x40] sm:$0xff]
    %v57 = vld [vmem:[#allocation5 + $0x48] sm:$0xff]
    %v58 = vld [vmem:[#allocation5 + $0x50] sm:$0xff]
    %v59 = vld [vmem:[#allocation5 + $0x58] sm:$0xff]
    %v60 = vld [vmem:[#allocation5 + $0x60] sm:$0xff]
    %v61 = vld [vmem:[#allocation5 + $0x68] sm:$0xff]
    %v62 = vld [vmem:[#allocation5 + $0x70] sm:$0xff]
    %v63 = vld [vmem:[#allocation5 + $0x78] sm:$0xff]
    %v64 = vld [vmem:[#allocation5 + $0x80] sm:$0xff]
    %v65 = vld [vmem:[#allocation5 + $0x88] sm:$0xff]
    %v66 = vld [vmem:[#allocation5 + $0x90] sm:$0xff]
    %v67 = vld [vmem:[#allocation5 + $0x98] sm:$0xff]
    %v68 = vld [vmem:[#allocation5 + $0xa0] sm:$0xff]
    %v69 = vld [vmem:[#allocation5 + $0xa8] sm:$0xff]
    %v70 = vld [vmem:[#allocation5 + $0xb0] sm:$0xff]
    %v71 = vld [vmem:[#allocation5 + $0xb8] sm:$0xff]
    %v72 = vld [vmem:[#allocation5 + $0xc0] sm:$0xff]
    %v73 = vld [vmem:[#allocation5 + $0xc8] sm:$0xff]
    %v74 = vld [vmem:[#allocation5 + $0xd0] sm:$0xff]
    %v75 = vld [vmem:[#allocation5 + $0xd8] sm:$0xff]
    %v76 = vld [vmem:[#allocation5 + $0xe0] sm:$0xff]
    %v77 = vld [vmem:[#allocation5 + $0xe8] sm:$0xff]
    %v78 = vld [vmem:[#allocation5 + $0xf0] sm:$0xff]
    %v79 = vld [vmem:[#allocation5 + $0xf8] sm:$0xff]
    %v80 = vld [vmem:[#allocation2] sm:$0x3]
    %81 = vmatprep.subr.mxu0 0.0
    %v82 = vand.u32 %v79, 4294901760
    %83 = vmatpush1.msra.mxu0 %v82
    %84 = vmatprep.subr.mxu0 0.0
    %v85 = vand.u32 %v78, 4294901760
    %86 = vmatpush1.msra.mxu0 %v85
    %87 = vmatprep.subr.mxu0 0.0
    %v88 = vand.u32 %v77, 4294901760
    %89 = vmatpush1.msra.mxu0 %v88
    %90 = vmatprep.subr.mxu0 0.0
    %v91 = vand.u32 %v76, 4294901760
    %92 = vmatpush1.msra.mxu0 %v91
    %93 = vmatprep.subr.mxu0 0.0
    %v94 = vand.u32 %v75, 4294901760
    %95 = vmatpush1.msra.mxu0 %v94
    %96 = vmatprep.subr.mxu0 0.0
    %v97 = vand.u32 %v74, 4294901760
    %98 = vmatpush1.msra.mxu0 %v97
    %99 = vmatprep.subr.mxu0 0.0
    %v100 = vand.u32 %v73, 4294901760
    %101 = vmatpush1.msra.mxu0 %v100
    %102 = vmatprep.subr.mxu0 0.0
    %v103 = vand.u32 %v72, 4294901760
    %104 = vmatpush1.msra.mxu0 %v103
    %105 = vmatprep.subr.mxu0 0.0
    %v106 = vand.u32 %v71, 4294901760
    %107 = vmatpush1.msra.mxu0 %v106
    %108 = vmatprep.subr.mxu0 0.0
    %v109 = vand.u32 %v70, 4294901760
    %110 = vmatpush1.msra.mxu0 %v109
    %111 = vmatprep.subr.mxu0 0.0
    %v112 = vand.u32 %v69, 4294901760
    %113 = vmatpush1.msra.mxu0 %v112
    %114 = vmatprep.subr.mxu0 0.0
    %v115 = vand.u32 %v68, 4294901760
    %116 = vmatpush1.msra.mxu0 %v115
    %117 = vmatprep.subr.mxu0 0.0
    %v118 = vand.u32 %v67, 4294901760
    %119 = vmatpush1.msra.mxu0 %v118
    %120 = vmatprep.subr.mxu0 0.0
    %v121 = vand.u32 %v66, 4294901760
    %122 = vmatpush1.msra.mxu0 %v121
    %123 = vmatprep.subr.mxu0 0.0
    %v124 = vand.u32 %v65, 4294901760
    %125 = vmatpush1.msra.mxu0 %v124
    %126 = vmatprep.subr.mxu0 0.0
    %v127 = vand.u32 %v64, 4294901760
    %128 = vmatpush1.msra.mxu0 %v127
    %129 = vmatprep.subr.mxu0 0.0
    %130 = vmatpush2.msra.mxu0 0.0
    %131 = vmatprep.subr.mxu0 0.0
    %132 = vmatpush2.msra.mxu0 0.0
    %133 = vmatprep.subr.mxu0 0.0
    %134 = vmatpush2.msra.mxu0 0.0
    %135 = vmatprep.subr.mxu0 0.0
    %136 = vmatpush2.msra.mxu0 0.0
    %137 = vmatprep.subr.mxu0 0.0
    %138 = vmatpush2.msra.mxu0 0.0
    %139 = vmatprep.subr.mxu0 0.0
    %140 = vmatpush2.msra.mxu0 0.0
    %141 = vmatprep.subr.mxu0 0.0
    %142 = vmatpush2.msra.mxu0 0.0
    %143 = vmatprep.subr.mxu0 0.0
    %144 = vmatpush2.msra.mxu0 0.0
    %145 = vmatprep.subr.mxu0 0.0
    %146 = vmatpush2.msra.mxu0 0.0
    %147 = vmatprep.subr.mxu0 0.0
    %148 = vmatpush2.msra.mxu0 0.0
    %149 = vmatprep.subr.mxu0 0.0
    %150 = vmatpush2.msra.mxu0 0.0
    %151 = vmatprep.subr.mxu0 0.0
    %152 = vmatpush2.msra.mxu0 0.0
    %153 = vmatprep.subr.mxu0 0.0
    %154 = vmatpush2.msra.mxu0 0.0
    %155 = vmatprep.subr.mxu0 0.0
    %156 = vmatpush2.msra.mxu0 0.0
    %157 = vmatprep.subr.mxu0 0.0
    %158 = vmatpush2.msra.mxu0 0.0
    %159 = vmatprep.subr.mxu0 0.0
    %160 = vmatpush2.msra.mxu0 0.0
    %161 = vmatprep.mubr.f32.mxu0 0.0
    %v162 = vand.u32 %v80, 4294901760
    %v163 = vsub.f32 %v80, %v162
    %v164 = vand.u32 %v163, 4294901760
    %v165 = vsub.f32 %v163, %v164
    %v166 = vand.u32 %v165, 4294901760
    %167 = vmatmul.mubr.f32.gmra.mxu0 %v166
    %v168 = vpop.f32.mrf.mxu0
    %v169 = vadd.f32 0.0, %v168
    %v170 = vpop.f32.mrf.mxu0
    %171 = vdwg.mxu0
    %172 = vmatprep.subr.mxu0 0.0
    %v173 = vand.u32 %v79, 4294901760
    %v174 = vsub.f32 %v79, %v173
    %v175 = vand.u32 %v174, 4294901760
    %v176 = vsub.f32 %v174, %v175
    %v177 = vand.u32 %v176, 4294901760
    %178 = vmatpush1.msra.mxu0 %v177
    %179 = vmatprep.subr.mxu0 0.0
    %v180 = vand.u32 %v78, 4294901760
    %v181 = vsub.f32 %v78, %v180
    %v182 = vand.u32 %v181, 4294901760
    %v183 = vsub.f32 %v181, %v182
    %v184 = vand.u32 %v183, 4294901760
    %185 = vmatpush1.msra.mxu0 %v184
    %186 = vmatprep.subr.mxu0 0.0
    %v187 = vand.u32 %v77, 4294901760
    %v188 = vsub.f32 %v77, %v187
    %v189 = vand.u32 %v188, 4294901760
    %v190 = vsub.f32 %v188, %v189
    %v191 = vand.u32 %v190, 4294901760
    %192 = vmatpush1.msra.mxu0 %v191
    %193 = vmatprep.subr.mxu0 0.0
    %v194 = vand.u32 %v76, 4294901760
    %v195 = vsub.f32 %v76, %v194
    %v196 = vand.u32 %v195, 4294901760
    %v197 = vsub.f32 %v195, %v196
    %v198 = vand.u32 %v197, 4294901760
    %199 = vmatpush1.msra.mxu0 %v198
    %200 = vmatprep.subr.mxu0 0.0
    %v201 = vand.u32 %v75, 4294901760
    %v202 = vsub.f32 %v75, %v201
    %v203 = vand.u32 %v202, 4294901760
    %v204 = vsub.f32 %v202, %v203
    %v205 = vand.u32 %v204, 4294901760
    %206 = vmatpush1.msra.mxu0 %v205
    %207 = vmatprep.subr.mxu0 0.0
    %v208 = vand.u32 %v74, 4294901760
    %v209 = vsub.f32 %v74, %v208
    %v210 = vand.u32 %v209, 4294901760
    %v211 = vsub.f32 %v209, %v210
    %v212 = vand.u32 %v211, 4294901760
    %213 = vmatpush1.msra.mxu0 %v212
    %214 = vmatprep.subr.mxu0 0.0
    %v215 = vand.u32 %v73, 4294901760
    %v216 = vsub.f32 %v73, %v215
    %v217 = vand.u32 %v216, 4294901760
    %v218 = vsub.f32 %v216, %v217
    %v219 = vand.u32 %v218, 4294901760
    %220 = vmatpush1.msra.mxu0 %v219
    %221 = vmatprep.subr.mxu0 0.0
    %v222 = vand.u32 %v72, 4294901760
    %v223 = vsub.f32 %v72, %v222
    %v224 = vand.u32 %v223, 4294901760
    %v225 = vsub.f32 %v223, %v224
    %v226 = vand.u32 %v225, 4294901760
    %227 = vmatpush1.msra.mxu0 %v226
    %228 = vmatprep.subr.mxu0 0.0
    %v229 = vand.u32 %v71, 4294901760
    %v230 = vsub.f32 %v71, %v229
    %v231 = vand.u32 %v230, 4294901760
    %v232 = vsub.f32 %v230, %v231
    %v233 = vand.u32 %v232, 4294901760
    %234 = vmatpush1.msra.mxu0 %v233
    %235 = vmatprep.subr.mxu0 0.0
    %v236 = vand.u32 %v70, 4294901760
    %v237 = vsub.f32 %v70, %v236
    %v238 = vand.u32 %v237, 4294901760
    %v239 = vsub.f32 %v237, %v238
    %v240 = vand.u32 %v239, 4294901760
    %241 = vmatpush1.msra.mxu0 %v240
    %242 = vmatprep.subr.mxu0 0.0
    %v243 = vand.u32 %v69, 4294901760
    %v244 = vsub.f32 %v69, %v243
    %v245 = vand.u32 %v244, 4294901760
    %v246 = vsub.f32 %v244, %v245
    %v247 = vand.u32 %v246, 4294901760
    %248 = vmatpush1.msra.mxu0 %v247
    %249 = vmatprep.subr.mxu0 0.0
    %v250 = vand.u32 %v68, 4294901760
    %v251 = vsub.f32 %v68, %v250
    %v252 = vand.u32 %v251, 4294901760
    %v253 = vsub.f32 %v251, %v252
    %v254 = vand.u32 %v253, 4294901760
    %255 = vmatpush1.msra.mxu0 %v254
    %256 = vmatprep.subr.mxu0 0.0
    %v257 = vand.u32 %v67, 4294901760
    %v258 = vsub.f32 %v67, %v257
    %v259 = vand.u32 %v258, 4294901760
    %v260 = vsub.f32 %v258, %v259
    %v261 = vand.u32 %v260, 4294901760
    %262 = vmatpush1.msra.mxu0 %v261
    %263 = vmatprep.subr.mxu0 0.0
    %v264 = vand.u32 %v66, 4294901760
    %v265 = vsub.f32 %v66, %v264
    %v266 = vand.u32 %v265, 4294901760
    %v267 = vsub.f32 %v265, %v266
    %v268 = vand.u32 %v267, 4294901760
    %269 = vmatpush1.msra.mxu0 %v268
    %270 = vmatprep.subr.mxu0 0.0
    %v271 = vand.u32 %v65, 4294901760
    %v272 = vsub.f32 %v65, %v271
    %v273 = vand.u32 %v272, 4294901760
    %v274 = vsub.f32 %v272, %v273
    %v275 = vand.u32 %v274, 4294901760
    %276 = vmatpush1.msra.mxu0 %v275
    %277 = vmatprep.subr.mxu0 0.0
    %v278 = vand.u32 %v64, 4294901760
    %v279 = vsub.f32 %v64, %v278
    %v280 = vand.u32 %v279, 4294901760
    %v281 = vsub.f32 %v279, %v280
    %v282 = vand.u32 %v281, 4294901760
    %283 = vmatpush1.msra.mxu0 %v282
    %284 = vmatprep.subr.mxu0 0.0
    %285 = vmatpush2.msra.mxu0 0.0
    %286 = vmatprep.subr.mxu0 0.0
    %287 = vmatpush2.msra.mxu0 0.0
    %288 = vmatprep.subr.mxu0 0.0
    %289 = vmatpush2.msra.mxu0 0.0
    %290 = vmatprep.subr.mxu0 0.0
    %291 = vmatpush2.msra.mxu0 0.0
    %292 = vmatprep.subr.mxu0 0.0
    %293 = vmatpush2.msra.mxu0 0.0
    %294 = vmatprep.subr.mxu0 0.0
    %295 = vmatpush2.msra.mxu0 0.0
    %296 = vmatprep.subr.mxu0 0.0
    %297 = vmatpush2.msra.mxu0 0.0
    %298 = vmatprep.subr.mxu0 0.0
    %299 = vmatpush2.msra.mxu0 0.0
    %300 = vmatprep.subr.mxu0 0.0
    %301 = vmatpush2.msra.mxu0 0.0
    %302 = vmatprep.subr.mxu0 0.0
    %303 = vmatpush2.msra.mxu0 0.0
    %304 = vmatprep.subr.mxu0 0.0
    %305 = vmatpush2.msra.mxu0 0.0
    %306 = vmatprep.subr.mxu0 0.0
    %307 = vmatpush2.msra.mxu0 0.0
    %308 = vmatprep.subr.mxu0 0.0
    %309 = vmatpush2.msra.mxu0 0.0
    %310 = vmatprep.subr.mxu0 0.0
    %311 = vmatpush2.msra.mxu0 0.0
    %312 = vmatprep.subr.mxu0 0.0
    %313 = vmatpush2.msra.mxu0 0.0
    %314 = vmatprep.subr.mxu0 0.0
    %315 = vmatpush2.msra.mxu0 0.0
    %316 = vmatprep.mubr.f32.mxu0 0.0
    %v317 = vand.u32 %v80, 4294901760
    %318 = vmatmul.mubr.f32.gmra.mxu0 %v317
    %v319 = vpop.f32.mrf.mxu0
    %v320 = vadd.f32 %v169, %v319
    %v321 = vpop.f32.mrf.mxu0
    %322 = vdwg.mxu0
    %323 = vmatprep.subr.mxu0 0.0
    %v324 = vand.u32 %v79, 4294901760
    %v325 = vsub.f32 %v79, %v324
    %326 = vmatpush1.msra.mxu0 %v325
    %327 = vmatprep.subr.mxu0 0.0
    %v328 = vand.u32 %v78, 4294901760
    %v329 = vsub.f32 %v78, %v328
    %330 = vmatpush1.msra.mxu0 %v329
    %331 = vmatprep.subr.mxu0 0.0
    %v332 = vand.u32 %v77, 4294901760
    %v333 = vsub.f32 %v77, %v332
    %334 = vmatpush1.msra.mxu0 %v333
    %335 = vmatprep.subr.mxu0 0.0
    %v336 = vand.u32 %v76, 4294901760
    %v337 = vsub.f32 %v76, %v336
    %338 = vmatpush1.msra.mxu0 %v337
    %339 = vmatprep.subr.mxu0 0.0
    %v340 = vand.u32 %v75, 4294901760
    %v341 = vsub.f32 %v75, %v340
    %342 = vmatpush1.msra.mxu0 %v341
    %343 = vmatprep.subr.mxu0 0.0
    %v344 = vand.u32 %v74, 4294901760
    %v345 = vsub.f32 %v74, %v344
    %346 = vmatpush1.msra.mxu0 %v345
    %347 = vmatprep.subr.mxu0 0.0
    %v348 = vand.u32 %v73, 4294901760
    %v349 = vsub.f32 %v73, %v348
    %350 = vmatpush1.msra.mxu0 %v349
    %351 = vmatprep.subr.mxu0 0.0
    %v352 = vand.u32 %v72, 4294901760
    %v353 = vsub.f32 %v72, %v352
    %354 = vmatpush1.msra.mxu0 %v353
    %355 = vmatprep.subr.mxu0 0.0
    %v356 = vand.u32 %v71, 4294901760
    %v357 = vsub.f32 %v71, %v356
    %358 = vmatpush1.msra.mxu0 %v357
    %359 = vmatprep.subr.mxu0 0.0
    %v360 = vand.u32 %v70, 4294901760
    %v361 = vsub.f32 %v70, %v360
    %362 = vmatpush1.msra.mxu0 %v361
    %363 = vmatprep.subr.mxu0 0.0
    %v364 = vand.u32 %v69, 4294901760
    %v365 = vsub.f32 %v69, %v364
    %366 = vmatpush1.msra.mxu0 %v365
    %367 = vmatprep.subr.mxu0 0.0
    %v368 = vand.u32 %v68, 4294901760
    %v369 = vsub.f32 %v68, %v368
    %370 = vmatpush1.msra.mxu0 %v369
    %371 = vmatprep.subr.mxu0 0.0
    %v372 = vand.u32 %v67, 4294901760
    %v373 = vsub.f32 %v67, %v372
    %374 = vmatpush1.msra.mxu0 %v373
    %375 = vmatprep.subr.mxu0 0.0
    %v376 = vand.u32 %v66, 4294901760
    %v377 = vsub.f32 %v66, %v376
    %378 = vmatpush1.msra.mxu0 %v377
    %379 = vmatprep.subr.mxu0 0.0
    %v380 = vand.u32 %v65, 4294901760
    %v381 = vsub.f32 %v65, %v380
    %382 = vmatpush1.msra.mxu0 %v381
    %383 = vmatprep.subr.mxu0 0.0
    %v384 = vand.u32 %v64, 4294901760
    %v385 = vsub.f32 %v64, %v384
    %386 = vmatpush1.msra.mxu0 %v385
    %387 = vmatprep.subr.mxu0 0.0
    %388 = vmatpush2.msra.mxu0 0.0
    %389 = vmatprep.subr.mxu0 0.0
    %390 = vmatpush2.msra.mxu0 0.0
    %391 = vmatprep.subr.mxu0 0.0
    %392 = vmatpush2.msra.mxu0 0.0
    %393 = vmatprep.subr.mxu0 0.0
    %394 = vmatpush2.msra.mxu0 0.0
    %395 = vmatprep.subr.mxu0 0.0
    %396 = vmatpush2.msra.mxu0 0.0
    %397 = vmatprep.subr.mxu0 0.0
    %398 = vmatpush2.msra.mxu0 0.0
    %399 = vmatprep.subr.mxu0 0.0
    %400 = vmatpush2.msra.mxu0 0.0
    %401 = vmatprep.subr.mxu0 0.0
    %402 = vmatpush2.msra.mxu0 0.0
    %403 = vmatprep.subr.mxu0 0.0
    %404 = vmatpush2.msra.mxu0 0.0
    %405 = vmatprep.subr.mxu0 0.0
    %406 = vmatpush2.msra.mxu0 0.0
    %407 = vmatprep.subr.mxu0 0.0
    %408 = vmatpush2.msra.mxu0 0.0
    %409 = vmatprep.subr.mxu0 0.0
    %410 = vmatpush2.msra.mxu0 0.0
    %411 = vmatprep.subr.mxu0 0.0
    %412 = vmatpush2.msra.mxu0 0.0
    %413 = vmatprep.subr.mxu0 0.0
    %414 = vmatpush2.msra.mxu0 0.0
    %415 = vmatprep.subr.mxu0 0.0
    %416 = vmatpush2.msra.mxu0 0.0
    %417 = vmatprep.subr.mxu0 0.0
    %418 = vmatpush2.msra.mxu0 0.0
    %419 = vmatprep.mubr.f32.mxu0 0.0
    %v420 = vand.u32 %v80, 4294901760
    %v421 = vsub.f32 %v80, %v420
    %422 = vmatmul.mubr.f32.gmra.mxu0 %v421
    %v423 = vpop.f32.mrf.mxu0
    %v424 = vadd.f32 %v320, %v423
    %v425 = vpop.f32.mrf.mxu0
    %426 = vdwg.mxu0
    %427 = vmatprep.subr.mxu0 0.0
    %v428 = vand.u32 %v79, 4294901760
    %429 = vmatpush1.msra.mxu0 %v428
    %430 = vmatprep.subr.mxu0 0.0
    %v431 = vand.u32 %v78, 4294901760
    %432 = vmatpush1.msra.mxu0 %v431
    %433 = vmatprep.subr.mxu0 0.0
    %v434 = vand.u32 %v77, 4294901760
    %435 = vmatpush1.msra.mxu0 %v434
    %436 = vmatprep.subr.mxu0 0.0
    %v437 = vand.u32 %v76, 4294901760
    %438 = vmatpush1.msra.mxu0 %v437
    %439 = vmatprep.subr.mxu0 0.0
    %v440 = vand.u32 %v75, 4294901760
    %441 = vmatpush1.msra.mxu0 %v440
    %442 = vmatprep.subr.mxu0 0.0
    %v443 = vand.u32 %v74, 4294901760
    %444 = vmatpush1.msra.mxu0 %v443
    %445 = vmatprep.subr.mxu0 0.0
    %v446 = vand.u32 %v73, 4294901760
    %447 = vmatpush1.msra.mxu0 %v446
    %448 = vmatprep.subr.mxu0 0.0
    %v449 = vand.u32 %v72, 4294901760
    %450 = vmatpush1.msra.mxu0 %v449
    %451 = vmatprep.subr.mxu0 0.0
    %v452 = vand.u32 %v71, 4294901760
    %453 = vmatpush1.msra.mxu0 %v452
    %454 = vmatprep.subr.mxu0 0.0
    %v455 = vand.u32 %v70, 4294901760
    %456 = vmatpush1.msra.mxu0 %v455
    %457 = vmatprep.subr.mxu0 0.0
    %v458 = vand.u32 %v69, 4294901760
    %459 = vmatpush1.msra.mxu0 %v458
    %460 = vmatprep.subr.mxu0 0.0
    %v461 = vand.u32 %v68, 4294901760
    %462 = vmatpush1.msra.mxu0 %v461
    %463 = vmatprep.subr.mxu0 0.0
    %v464 = vand.u32 %v67, 4294901760
    %465 = vmatpush1.msra.mxu0 %v464
    %466 = vmatprep.subr.mxu0 0.0
    %v467 = vand.u32 %v66, 4294901760
    %468 = vmatpush1.msra.mxu0 %v467
    %469 = vmatprep.subr.mxu0 0.0
    %v470 = vand.u32 %v65, 4294901760
    %471 = vmatpush1.msra.mxu0 %v470
    %472 = vmatprep.subr.mxu0 0.0
    %v473 = vand.u32 %v64, 4294901760
    %474 = vmatpush1.msra.mxu0 %v473
    %475 = vmatprep.subr.mxu0 0.0
    %476 = vmatpush2.msra.mxu0 0.0
    %477 = vmatprep.subr.mxu0 0.0
    %478 = vmatpush2.msra.mxu0 0.0
    %479 = vmatprep.subr.mxu0 0.0
    %480 = vmatpush2.msra.mxu0 0.0
    %481 = vmatprep.subr.mxu0 0.0
    %482 = vmatpush2.msra.mxu0 0.0
    %483 = vmatprep.subr.mxu0 0.0
    %484 = vmatpush2.msra.mxu0 0.0
    %485 = vmatprep.subr.mxu0 0.0
    %486 = vmatpush2.msra.mxu0 0.0
    %487 = vmatprep.subr.mxu0 0.0
    %488 = vmatpush2.msra.mxu0 0.0
    %489 = vmatprep.subr.mxu0 0.0
    %490 = vmatpush2.msra.mxu0 0.0
    %491 = vmatprep.subr.mxu0 0.0
    %492 = vmatpush2.msra.mxu0 0.0
    %493 = vmatprep.subr.mxu0 0.0
    %494 = vmatpush2.msra.mxu0 0.0
    %495 = vmatprep.subr.mxu0 0.0
    %496 = vmatpush2.msra.mxu0 0.0
    %497 = vmatprep.subr.mxu0 0.0
    %498 = vmatpush2.msra.mxu0 0.0
    %499 = vmatprep.subr.mxu0 0.0
    %500 = vmatpush2.msra.mxu0 0.0
    %501 = vmatprep.subr.mxu0 0.0
    %502 = vmatpush2.msra.mxu0 0.0
    %503 = vmatprep.subr.mxu0 0.0
    %504 = vmatpush2.msra.mxu0 0.0
    %505 = vmatprep.subr.mxu0 0.0
    %506 = vmatpush2.msra.mxu0 0.0
    %507 = vmatprep.mubr.f32.mxu0 0.0
    %v508 = vand.u32 %v80, 4294901760
    %v509 = vsub.f32 %v80, %v508
    %v510 = vand.u32 %v509, 4294901760
    %511 = vmatmul.mubr.f32.gmra.mxu0 %v510
    %v512 = vpop.f32.mrf.mxu0
    %v513 = vadd.f32 %v424, %v512
    %v514 = vpop.f32.mrf.mxu0
    %515 = vdwg.mxu0
    %516 = vmatprep.subr.mxu0 0.0
    %v517 = vand.u32 %v79, 4294901760
    %v518 = vsub.f32 %v79, %v517
    %v519 = vand.u32 %v518, 4294901760
    %520 = vmatpush1.msra.mxu0 %v519
    %521 = vmatprep.subr.mxu0 0.0
    %v522 = vand.u32 %v78, 4294901760
    %v523 = vsub.f32 %v78, %v522
    %v524 = vand.u32 %v523, 4294901760
    %525 = vmatpush1.msra.mxu0 %v524
    %526 = vmatprep.subr.mxu0 0.0
    %v527 = vand.u32 %v77, 4294901760
    %v528 = vsub.f32 %v77, %v527
    %v529 = vand.u32 %v528, 4294901760
    %530 = vmatpush1.msra.mxu0 %v529
    %531 = vmatprep.subr.mxu0 0.0
    %v532 = vand.u32 %v76, 4294901760
    %v533 = vsub.f32 %v76, %v532
    %v534 = vand.u32 %v533, 4294901760
    %535 = vmatpush1.msra.mxu0 %v534
    %536 = vmatprep.subr.mxu0 0.0
    %v537 = vand.u32 %v75, 4294901760
    %v538 = vsub.f32 %v75, %v537
    %v539 = vand.u32 %v538, 4294901760
    %540 = vmatpush1.msra.mxu0 %v539
    %541 = vmatprep.subr.mxu0 0.0
    %v542 = vand.u32 %v74, 4294901760
    %v543 = vsub.f32 %v74, %v542
    %v544 = vand.u32 %v543, 4294901760
    %545 = vmatpush1.msra.mxu0 %v544
    %546 = vmatprep.subr.mxu0 0.0
    %v547 = vand.u32 %v73, 4294901760
    %v548 = vsub.f32 %v73, %v547
    %v549 = vand.u32 %v548, 4294901760
    %550 = vmatpush1.msra.mxu0 %v549
    %551 = vmatprep.subr.mxu0 0.0
    %v552 = vand.u32 %v72, 4294901760
    %v553 = vsub.f32 %v72, %v552
    %v554 = vand.u32 %v553, 4294901760
    %555 = vmatpush1.msra.mxu0 %v554
    %556 = vmatprep.subr.mxu0 0.0
    %v557 = vand.u32 %v71, 4294901760
    %v558 = vsub.f32 %v71, %v557
    %v559 = vand.u32 %v558, 4294901760
    %560 = vmatpush1.msra.mxu0 %v559
    %561 = vmatprep.subr.mxu0 0.0
    %v562 = vand.u32 %v70, 4294901760
    %v563 = vsub.f32 %v70, %v562
    %v564 = vand.u32 %v563, 4294901760
    %565 = vmatpush1.msra.mxu0 %v564
    %566 = vmatprep.subr.mxu0 0.0
    %v567 = vand.u32 %v69, 4294901760
    %v568 = vsub.f32 %v69, %v567
    %v569 = vand.u32 %v568, 4294901760
    %570 = vmatpush1.msra.mxu0 %v569
    %571 = vmatprep.subr.mxu0 0.0
    %v572 = vand.u32 %v68, 4294901760
    %v573 = vsub.f32 %v68, %v572
    %v574 = vand.u32 %v573, 4294901760
    %575 = vmatpush1.msra.mxu0 %v574
    %576 = vmatprep.subr.mxu0 0.0
    %v577 = vand.u32 %v67, 4294901760
    %v578 = vsub.f32 %v67, %v577
    %v579 = vand.u32 %v578, 4294901760
    %580 = vmatpush1.msra.mxu0 %v579
    %581 = vmatprep.subr.mxu0 0.0
    %v582 = vand.u32 %v66, 4294901760
    %v583 = vsub.f32 %v66, %v582
    %v584 = vand.u32 %v583, 4294901760
    %585 = vmatpush1.msra.mxu0 %v584
    %586 = vmatprep.subr.mxu0 0.0
    %v587 = vand.u32 %v65, 4294901760
    %v588 = vsub.f32 %v65, %v587
    %v589 = vand.u32 %v588, 4294901760
    %590 = vmatpush1.msra.mxu0 %v589
    %591 = vmatprep.subr.mxu0 0.0
    %v592 = vand.u32 %v64, 4294901760
    %v593 = vsub.f32 %v64, %v592
    %v594 = vand.u32 %v593, 4294901760
    %595 = vmatpush1.msra.mxu0 %v594
    %596 = vmatprep.subr.mxu0 0.0
    %597 = vmatpush2.msra.mxu0 0.0
    %598 = vmatprep.subr.mxu0 0.0
    %599 = vmatpush2.msra.mxu0 0.0
    %600 = vmatprep.subr.mxu0 0.0
    %601 = vmatpush2.msra.mxu0 0.0
    %602 = vmatprep.subr.mxu0 0.0
    %603 = vmatpush2.msra.mxu0 0.0
    %604 = vmatprep.subr.mxu0 0.0
    %605 = vmatpush2.msra.mxu0 0.0
    %606 = vmatprep.subr.mxu0 0.0
    %607 = vmatpush2.msra.mxu0 0.0
    %608 = vmatprep.subr.mxu0 0.0
    %609 = vmatpush2.msra.mxu0 0.0
    %610 = vmatprep.subr.mxu0 0.0
    %611 = vmatpush2.msra.mxu0 0.0
    %612 = vmatprep.subr.mxu0 0.0
    %613 = vmatpush2.msra.mxu0 0.0
    %614 = vmatprep.subr.mxu0 0.0
    %615 = vmatpush2.msra.mxu0 0.0
    %616 = vmatprep.subr.mxu0 0.0
    %617 = vmatpush2.msra.mxu0 0.0
    %618 = vmatprep.subr.mxu0 0.0
    %619 = vmatpush2.msra.mxu0 0.0
    %620 = vmatprep.subr.mxu0 0.0
    %621 = vmatpush2.msra.mxu0 0.0
    %622 = vmatprep.subr.mxu0 0.0
    %623 = vmatpush2.msra.mxu0 0.0
    %624 = vmatprep.subr.mxu0 0.0
    %625 = vmatpush2.msra.mxu0 0.0
    %626 = vmatprep.subr.mxu0 0.0
    %627 = vmatpush2.msra.mxu0 0.0
    %628 = vmatprep.mubr.f32.mxu0 0.0
    %v629 = vand.u32 %v80, 4294901760
    %630 = vmatmul.mubr.f32.gmra.mxu0 %v629
    %v631 = vpop.f32.mrf.mxu0
    %v632 = vadd.f32 %v513, %v631
    %v633 = vpop.f32.mrf.mxu0
    %634 = vdwg.mxu0
    %635 = vmatprep.subr.mxu0 0.0
    %v636 = vand.u32 %v79, 4294901760
    %637 = vmatpush1.msra.mxu0 %v636
    %638 = vmatprep.subr.mxu0 0.0
    %v639 = vand.u32 %v78, 4294901760
    %640 = vmatpush1.msra.mxu0 %v639
    %641 = vmatprep.subr.mxu0 0.0
    %v642 = vand.u32 %v77, 4294901760
    %643 = vmatpush1.msra.mxu0 %v642
    %644 = vmatprep.subr.mxu0 0.0
    %v645 = vand.u32 %v76, 4294901760
    %646 = vmatpush1.msra.mxu0 %v645
    %647 = vmatprep.subr.mxu0 0.0
    %v648 = vand.u32 %v75, 4294901760
    %649 = vmatpush1.msra.mxu0 %v648
    %650 = vmatprep.subr.mxu0 0.0
    %v651 = vand.u32 %v74, 4294901760
    %652 = vmatpush1.msra.mxu0 %v651
    %653 = vmatprep.subr.mxu0 0.0
    %v654 = vand.u32 %v73, 4294901760
    %655 = vmatpush1.msra.mxu0 %v654
    %656 = vmatprep.subr.mxu0 0.0
    %v657 = vand.u32 %v72, 4294901760
    %658 = vmatpush1.msra.mxu0 %v657
    %659 = vmatprep.subr.mxu0 0.0
    %v660 = vand.u32 %v71, 4294901760
    %661 = vmatpush1.msra.mxu0 %v660
    %662 = vmatprep.subr.mxu0 0.0
    %v663 = vand.u32 %v70, 4294901760
    %664 = vmatpush1.msra.mxu0 %v663
    %665 = vmatprep.subr.mxu0 0.0
    %v666 = vand.u32 %v69, 4294901760
    %667 = vmatpush1.msra.mxu0 %v666
    %668 = vmatprep.subr.mxu0 0.0
    %v669 = vand.u32 %v68, 4294901760
    %670 = vmatpush1.msra.mxu0 %v669
    %671 = vmatprep.subr.mxu0 0.0
    %v672 = vand.u32 %v67, 4294901760
    %673 = vmatpush1.msra.mxu0 %v672
    %674 = vmatprep.subr.mxu0 0.0
    %v675 = vand.u32 %v66, 4294901760
    %676 = vmatpush1.msra.mxu0 %v675
    %677 = vmatprep.subr.mxu0 0.0
    %v678 = vand.u32 %v65, 4294901760
    %679 = vmatpush1.msra.mxu0 %v678
    %680 = vmatprep.subr.mxu0 0.0
    %v681 = vand.u32 %v64, 4294901760
    %682 = vmatpush1.msra.mxu0 %v681
    %683 = vmatprep.subr.mxu0 0.0
    %684 = vmatpush2.msra.mxu0 0.0
    %685 = vmatprep.subr.mxu0 0.0
    %686 = vmatpush2.msra.mxu0 0.0
    %687 = vmatprep.subr.mxu0 0.0
    %688 = vmatpush2.msra.mxu0 0.0
    %689 = vmatprep.subr.mxu0 0.0
    %690 = vmatpush2.msra.mxu0 0.0
    %691 = vmatprep.subr.mxu0 0.0
    %692 = vmatpush2.msra.mxu0 0.0
    %693 = vmatprep.subr.mxu0 0.0
    %694 = vmatpush2.msra.mxu0 0.0
    %695 = vmatprep.subr.mxu0 0.0
    %696 = vmatpush2.msra.mxu0 0.0
    %697 = vmatprep.subr.mxu0 0.0
    %698 = vmatpush2.msra.mxu0 0.0
    %699 = vmatprep.subr.mxu0 0.0
    %700 = vmatpush2.msra.mxu0 0.0
    %701 = vmatprep.subr.mxu0 0.0
    %702 = vmatpush2.msra.mxu0 0.0
    %703 = vmatprep.subr.mxu0 0.0
    %704 = vmatpush2.msra.mxu0 0.0
    %705 = vmatprep.subr.mxu0 0.0
    %706 = vmatpush2.msra.mxu0 0.0
    %707 = vmatprep.subr.mxu0 0.0
    %708 = vmatpush2.msra.mxu0 0.0
    %709 = vmatprep.subr.mxu0 0.0
    %710 = vmatpush2.msra.mxu0 0.0
    %711 = vmatprep.subr.mxu0 0.0
    %712 = vmatpush2.msra.mxu0 0.0
    %713 = vmatprep.subr.mxu0 0.0
    %714 = vmatpush2.msra.mxu0 0.0
    %715 = vmatprep.mubr.f32.mxu0 0.0
    %v716 = vand.u32 %v80, 4294901760
    %717 = vmatmul.mubr.f32.gmra.mxu0 %v716
    %v718 = vpop.f32.mrf.mxu0
    %v719 = vadd.f32 %v632, %v718
    %v720 = vpop.f32.mrf.mxu0
    %721 = vdwg.mxu0
    %v722 = vld [vmem:[%s0] sm:$0xff]
    %v723 = vld [vmem:[%s1] sm:$0xff]
    %v724 = vmul.f32 %v723, 0.999995
    %726 = vset.pattern.permute.xlu0 0
    %727 = vperm.xlu0 %726, %v724
    %v728 = vpop.permute.xlu0 %727
    %v730 = vlaneseq
    %v731 = vshrl.u32 %v730, 7
    %v732 = vsub.s32 0, %v731
    %v733 = vrot.slane %v47, %v732
    %v734 = vmul.f32 %v728, %v733
    %v735 = vlaneseq
    %v736 = vshrl.u32 %v735, 7
    %v737 = vsub.s32 1, %v736
    %v738 = vrot.slane %v47, %v737
    %v739 = vadd.f32 %v734, %v738
    %vm740 = vcmp.ne.f32.partialorder %v723, %v723
    %v741 = vsel %vm740, 1, 0
    %742 = vset.pattern.permute.xlu0 0
    %743 = vperm.xlu0 %742, %v741
    %v744 = vpop.permute.xlu0 %743
    %vm745 = vcmp.eq.s32.totalorder %v744, 1
    %v746 = vsel %vm745, %v722, %v739
    %v747 = vlaneseq
    %v748 = vshrl.u32 %v747, 7
    %v749 = vsub.s32 0, %v748
    %v750 = vrot.slane %v719, %v749
    %751 = vmatprep.subr.mxu0 0.0
    %v752 = vand.u32 %v63, 4294901760
    %753 = vmatpush1.msra.mxu0 %v752
    %754 = vmatprep.subr.mxu0 0.0
    %v755 = vand.u32 %v62, 4294901760
    %756 = vmatpush1.msra.mxu0 %v755
    %757 = vmatprep.subr.mxu0 0.0
    %v758 = vand.u32 %v61, 4294901760
    %759 = vmatpush1.msra.mxu0 %v758
    %760 = vmatprep.subr.mxu0 0.0
    %v761 = vand.u32 %v60, 4294901760
    %762 = vmatpush1.msra.mxu0 %v761
    %763 = vmatprep.subr.mxu0 0.0
    %v764 = vand.u32 %v59, 4294901760
    %765 = vmatpush1.msra.mxu0 %v764
    %766 = vmatprep.subr.mxu0 0.0
    %v767 = vand.u32 %v58, 4294901760
    %768 = vmatpush1.msra.mxu0 %v767
    %769 = vmatprep.subr.mxu0 0.0
    %v770 = vand.u32 %v57, 4294901760
    %771 = vmatpush1.msra.mxu0 %v770
    %772 = vmatprep.subr.mxu0 0.0
    %v773 = vand.u32 %v56, 4294901760
    %774 = vmatpush1.msra.mxu0 %v773
    %775 = vmatprep.subr.mxu0 0.0
    %v776 = vand.u32 %v55, 4294901760
    %777 = vmatpush1.msra.mxu0 %v776
    %778 = vmatprep.subr.mxu0 0.0
    %v779 = vand.u32 %v54, 4294901760
    %780 = vmatpush1.msra.mxu0 %v779
    %781 = vmatprep.subr.mxu0 0.0
    %v782 = vand.u32 %v53, 4294901760
    %783 = vmatpush1.msra.mxu0 %v782
    %784 = vmatprep.subr.mxu0 0.0
    %v785 = vand.u32 %v52, 4294901760
    %786 = vmatpush1.msra.mxu0 %v785
    %787 = vmatprep.subr.mxu0 0.0
    %v788 = vand.u32 %v51, 4294901760
    %789 = vmatpush1.msra.mxu0 %v788
    %790 = vmatprep.subr.mxu0 0.0
    %v791 = vand.u32 %v50, 4294901760
    %792 = vmatpush1.msra.mxu0 %v791
    %793 = vmatprep.subr.mxu0 0.0
    %v794 = vand.u32 %v49, 4294901760
    %795 = vmatpush1.msra.mxu0 %v794
    %796 = vmatprep.subr.mxu0 0.0
    %v797 = vand.u32 %v48, 4294901760
    %798 = vmatpush1.msra.mxu0 %v797
    %799 = vmatprep.subr.mxu0 0.0
    %800 = vmatpush2.msra.mxu0 0.0
    %801 = vmatprep.subr.mxu0 0.0
    %802 = vmatpush2.msra.mxu0 0.0
    %803 = vmatprep.subr.mxu0 0.0
    %804 = vmatpush2.msra.mxu0 0.0
    %805 = vmatprep.subr.mxu0 0.0
    %806 = vmatpush2.msra.mxu0 0.0
    %807 = vmatprep.subr.mxu0 0.0
    %808 = vmatpush2.msra.mxu0 0.0
    %809 = vmatprep.subr.mxu0 0.0
    %810 = vmatpush2.msra.mxu0 0.0
    %811 = vmatprep.subr.mxu0 0.0
    %812 = vmatpush2.msra.mxu0 0.0
    %813 = vmatprep.subr.mxu0 0.0
    %814 = vmatpush2.msra.mxu0 0.0
    %815 = vmatprep.subr.mxu0 0.0
    %816 = vmatpush2.msra.mxu0 0.0
    %817 = vmatprep.subr.mxu0 0.0
    %818 = vmatpush2.msra.mxu0 0.0
    %819 = vmatprep.subr.mxu0 0.0
    %820 = vmatpush2.msra.mxu0 0.0
    %821 = vmatprep.subr.mxu0 0.0
    %822 = vmatpush2.msra.mxu0 0.0
    %823 = vmatprep.subr.mxu0 0.0
    %824 = vmatpush2.msra.mxu0 0.0
    %825 = vmatprep.subr.mxu0 0.0
    %826 = vmatpush2.msra.mxu0 0.0
    %827 = vmatprep.subr.mxu0 0.0
    %828 = vmatpush2.msra.mxu0 0.0
    %829 = vmatprep.subr.mxu0 0.0
    %830 = vmatpush2.msra.mxu0 0.0
    %831 = vmatprep.mubr.f32.mxu0 0.0
    %v832 = vand.u32 %v746, 4294901760
    %v833 = vsub.f32 %v746, %v832
    %v834 = vand.u32 %v833, 4294901760
    %v835 = vsub.f32 %v833, %v834
    %v836 = vand.u32 %v835, 4294901760
    %837 = vmatmul.mubr.f32.gmra.mxu0 %v836
    %v838 = vpop.f32.mrf.mxu0
    %v839 = vadd.f32 %v750, %v838
    %v840 = vpop.f32.mrf.mxu0
    %841 = vdwg.mxu0
    %842 = vmatprep.subr.mxu0 0.0
    %v843 = vand.u32 %v63, 4294901760
    %v844 = vsub.f32 %v63, %v843
    %v845 = vand.u32 %v844, 4294901760
    %v846 = vsub.f32 %v844, %v845
    %v847 = vand.u32 %v846, 4294901760
    %848 = vmatpush1.msra.mxu0 %v847
    %849 = vmatprep.subr.mxu0 0.0
    %v850 = vand.u32 %v62, 4294901760
    %v851 = vsub.f32 %v62, %v850
    %v852 = vand.u32 %v851, 4294901760
    %v853 = vsub.f32 %v851, %v852
    %v854 = vand.u32 %v853, 4294901760
    %855 = vmatpush1.msra.mxu0 %v854
    %856 = vmatprep.subr.mxu0 0.0
    %v857 = vand.u32 %v61, 4294901760
    %v858 = vsub.f32 %v61, %v857
    %v859 = vand.u32 %v858, 4294901760
    %v860 = vsub.f32 %v858, %v859
    %v861 = vand.u32 %v860, 4294901760
    %862 = vmatpush1.msra.mxu0 %v861
    %863 = vmatprep.subr.mxu0 0.0
    %v864 = vand.u32 %v60, 4294901760
    %v865 = vsub.f32 %v60, %v864
    %v866 = vand.u32 %v865, 4294901760
    %v867 = vsub.f32 %v865, %v866
    %v868 = vand.u32 %v867, 4294901760
    %869 = vmatpush1.msra.mxu0 %v868
    %870 = vmatprep.subr.mxu0 0.0
    %v871 = vand.u32 %v59, 4294901760
    %v872 = vsub.f32 %v59, %v871
    %v873 = vand.u32 %v872, 4294901760
    %v874 = vsub.f32 %v872, %v873
    %v875 = vand.u32 %v874, 4294901760
    %876 = vmatpush1.msra.mxu0 %v875
    %877 = vmatprep.subr.mxu0 0.0
    %v878 = vand.u32 %v58, 4294901760
    %v879 = vsub.f32 %v58, %v878
    %v880 = vand.u32 %v879, 4294901760
    %v881 = vsub.f32 %v879, %v880
    %v882 = vand.u32 %v881, 4294901760
    %883 = vmatpush1.msra.mxu0 %v882
    %884 = vmatprep.subr.mxu0 0.0
    %v885 = vand.u32 %v57, 4294901760
    %v886 = vsub.f32 %v57, %v885
    %v887 = vand.u32 %v886, 4294901760
    %v888 = vsub.f32 %v886, %v887
    %v889 = vand.u32 %v888, 4294901760
    %890 = vmatpush1.msra.mxu0 %v889
    %891 = vmatprep.subr.mxu0 0.0
    %v892 = vand.u32 %v56, 4294901760
    %v893 = vsub.f32 %v56, %v892
    %v894 = vand.u32 %v893, 4294901760
    %v895 = vsub.f32 %v893, %v894
    %v896 = vand.u32 %v895, 4294901760
    %897 = vmatpush1.msra.mxu0 %v896
    %898 = vmatprep.subr.mxu0 0.0
    %v899 = vand.u32 %v55, 4294901760
    %v900 = vsub.f32 %v55, %v899
    %v901 = vand.u32 %v900, 4294901760
    %v902 = vsub.f32 %v900, %v901
    %v903 = vand.u32 %v902, 4294901760
    %904 = vmatpush1.msra.mxu0 %v903
    %905 = vmatprep.subr.mxu0 0.0
    %v906 = vand.u32 %v54, 4294901760
    %v907 = vsub.f32 %v54, %v906
    %v908 = vand.u32 %v907, 4294901760
    %v909 = vsub.f32 %v907, %v908
    %v910 = vand.u32 %v909, 4294901760
    %911 = vmatpush1.msra.mxu0 %v910
    %912 = vmatprep.subr.mxu0 0.0
    %v913 = vand.u32 %v53, 4294901760
    %v914 = vsub.f32 %v53, %v913
    %v915 = vand.u32 %v914, 4294901760
    %v916 = vsub.f32 %v914, %v915
    %v917 = vand.u32 %v916, 4294901760
    %918 = vmatpush1.msra.mxu0 %v917
    %919 = vmatprep.subr.mxu0 0.0
    %v920 = vand.u32 %v52, 4294901760
    %v921 = vsub.f32 %v52, %v920
    %v922 = vand.u32 %v921, 4294901760
    %v923 = vsub.f32 %v921, %v922
    %v924 = vand.u32 %v923, 4294901760
    %925 = vmatpush1.msra.mxu0 %v924
    %926 = vmatprep.subr.mxu0 0.0
    %v927 = vand.u32 %v51, 4294901760
    %v928 = vsub.f32 %v51, %v927
    %v929 = vand.u32 %v928, 4294901760
    %v930 = vsub.f32 %v928, %v929
    %v931 = vand.u32 %v930, 4294901760
    %932 = vmatpush1.msra.mxu0 %v931
    %933 = vmatprep.subr.mxu0 0.0
    %v934 = vand.u32 %v50, 4294901760
    %v935 = vsub.f32 %v50, %v934
    %v936 = vand.u32 %v935, 4294901760
    %v937 = vsub.f32 %v935, %v936
    %v938 = vand.u32 %v937, 4294901760
    %939 = vmatpush1.msra.mxu0 %v938
    %940 = vmatprep.subr.mxu0 0.0
    %v941 = vand.u32 %v49, 4294901760
    %v942 = vsub.f32 %v49, %v941
    %v943 = vand.u32 %v942, 4294901760
    %v944 = vsub.f32 %v942, %v943
    %v945 = vand.u32 %v944, 4294901760
    %946 = vmatpush1.msra.mxu0 %v945
    %947 = vmatprep.subr.mxu0 0.0
    %v948 = vand.u32 %v48, 4294901760
    %v949 = vsub.f32 %v48, %v948
    %v950 = vand.u32 %v949, 4294901760
    %v951 = vsub.f32 %v949, %v950
    %v952 = vand.u32 %v951, 4294901760
    %953 = vmatpush1.msra.mxu0 %v952
    %954 = vmatprep.subr.mxu0 0.0
    %955 = vmatpush2.msra.mxu0 0.0
    %956 = vmatprep.subr.mxu0 0.0
    %957 = vmatpush2.msra.mxu0 0.0
    %958 = vmatprep.subr.mxu0 0.0
    %959 = vmatpush2.msra.mxu0 0.0
    %960 = vmatprep.subr.mxu0 0.0
    %961 = vmatpush2.msra.mxu0 0.0
    %962 = vmatprep.subr.mxu0 0.0
    %963 = vmatpush2.msra.mxu0 0.0
    %964 = vmatprep.subr.mxu0 0.0
    %965 = vmatpush2.msra.mxu0 0.0
    %966 = vmatprep.subr.mxu0 0.0
    %967 = vmatpush2.msra.mxu0 0.0
    %968 = vmatprep.subr.mxu0 0.0
    %969 = vmatpush2.msra.mxu0 0.0
    %970 = vmatprep.subr.mxu0 0.0
    %971 = vmatpush2.msra.mxu0 0.0
    %972 = vmatprep.subr.mxu0 0.0
    %973 = vmatpush2.msra.mxu0 0.0
    %974 = vmatprep.subr.mxu0 0.0
    %975 = vmatpush2.msra.mxu0 0.0
    %976 = vmatprep.subr.mxu0 0.0
    %977 = vmatpush2.msra.mxu0 0.0
    %978 = vmatprep.subr.mxu0 0.0
    %979 = vmatpush2.msra.mxu0 0.0
    %980 = vmatprep.subr.mxu0 0.0
    %981 = vmatpush2.msra.mxu0 0.0
    %982 = vmatprep.subr.mxu0 0.0
    %983 = vmatpush2.msra.mxu0 0.0
    %984 = vmatprep.subr.mxu0 0.0
    %985 = vmatpush2.msra.mxu0 0.0
    %986 = vmatprep.mubr.f32.mxu0 0.0
    %v987 = vand.u32 %v746, 4294901760
    %988 = vmatmul.mubr.f32.gmra.mxu0 %v987
    %v989 = vpop.f32.mrf.mxu0
    %v990 = vadd.f32 %v839, %v989
    %v991 = vpop.f32.mrf.mxu0
    %992 = vdwg.mxu0
    %993 = vmatprep.subr.mxu0 0.0
    %v994 = vand.u32 %v63, 4294901760
    %v995 = vsub.f32 %v63, %v994
    %996 = vmatpush1.msra.mxu0 %v995
    %997 = vmatprep.subr.mxu0 0.0
    %v998 = vand.u32 %v62, 4294901760
    %v999 = vsub.f32 %v62, %v998
    %1000 = vmatpush1.msra.mxu0 %v999
    %1001 = vmatprep.subr.mxu0 0.0
    %v1002 = vand.u32 %v61, 4294901760
    %v1003 = vsub.f32 %v61, %v1002
    %1004 = vmatpush1.msra.mxu0 %v1003
    %1005 = vmatprep.subr.mxu0 0.0
    %v1006 = vand.u32 %v60, 4294901760
    %v1007 = vsub.f32 %v60, %v1006
    %1008 = vmatpush1.msra.mxu0 %v1007
    %1009 = vmatprep.subr.mxu0 0.0
    %v1010 = vand.u32 %v59, 4294901760
    %v1011 = vsub.f32 %v59, %v1010
    %1012 = vmatpush1.msra.mxu0 %v1011
    %1013 = vmatprep.subr.mxu0 0.0
    %v1014 = vand.u32 %v58, 4294901760
    %v1015 = vsub.f32 %v58, %v1014
    %1016 = vmatpush1.msra.mxu0 %v1015
    %1017 = vmatprep.subr.mxu0 0.0
    %v1018 = vand.u32 %v57, 4294901760
    %v1019 = vsub.f32 %v57, %v1018
    %1020 = vmatpush1.msra.mxu0 %v1019
    %1021 = vmatprep.subr.mxu0 0.0
    %v1022 = vand.u32 %v56, 4294901760
    %v1023 = vsub.f32 %v56, %v1022
    %1024 = vmatpush1.msra.mxu0 %v1023
    %1025 = vmatprep.subr.mxu0 0.0
    %v1026 = vand.u32 %v55, 4294901760
    %v1027 = vsub.f32 %v55, %v1026
    %1028 = vmatpush1.msra.mxu0 %v1027
    %1029 = vmatprep.subr.mxu0 0.0
    %v1030 = vand.u32 %v54, 4294901760
    %v1031 = vsub.f32 %v54, %v1030
    %1032 = vmatpush1.msra.mxu0 %v1031
    %1033 = vmatprep.subr.mxu0 0.0
    %v1034 = vand.u32 %v53, 4294901760
    %v1035 = vsub.f32 %v53, %v1034
    %1036 = vmatpush1.msra.mxu0 %v1035
    %1037 = vmatprep.subr.mxu0 0.0
    %v1038 = vand.u32 %v52, 4294901760
    %v1039 = vsub.f32 %v52, %v1038
    %1040 = vmatpush1.msra.mxu0 %v1039
    %1041 = vmatprep.subr.mxu0 0.0
    %v1042 = vand.u32 %v51, 4294901760
    %v1043 = vsub.f32 %v51, %v1042
    %1044 = vmatpush1.msra.mxu0 %v1043
    %1045 = vmatprep.subr.mxu0 0.0
    %v1046 = vand.u32 %v50, 4294901760
    %v1047 = vsub.f32 %v50, %v1046
    %1048 = vmatpush1.msra.mxu0 %v1047
    %1049 = vmatprep.subr.mxu0 0.0
    %v1050 = vand.u32 %v49, 4294901760
    %v1051 = vsub.f32 %v49, %v1050
    %1052 = vmatpush1.msra.mxu0 %v1051
    %1053 = vmatprep.subr.mxu0 0.0
    %v1054 = vand.u32 %v48, 4294901760
    %v1055 = vsub.f32 %v48, %v1054
    %1056 = vmatpush1.msra.mxu0 %v1055
    %1057 = vmatprep.subr.mxu0 0.0
    %1058 = vmatpush2.msra.mxu0 0.0
    %1059 = vmatprep.subr.mxu0 0.0
    %1060 = vmatpush2.msra.mxu0 0.0
    %1061 = vmatprep.subr.mxu0 0.0
    %1062 = vmatpush2.msra.mxu0 0.0
    %1063 = vmatprep.subr.mxu0 0.0
    %1064 = vmatpush2.msra.mxu0 0.0
    %1065 = vmatprep.subr.mxu0 0.0
    %1066 = vmatpush2.msra.mxu0 0.0
    %1067 = vmatprep.subr.mxu0 0.0
    %1068 = vmatpush2.msra.mxu0 0.0
    %1069 = vmatprep.subr.mxu0 0.0
    %1070 = vmatpush2.msra.mxu0 0.0
    %1071 = vmatprep.subr.mxu0 0.0
    %1072 = vmatpush2.msra.mxu0 0.0
    %1073 = vmatprep.subr.mxu0 0.0
    %1074 = vmatpush2.msra.mxu0 0.0
    %1075 = vmatprep.subr.mxu0 0.0
    %1076 = vmatpush2.msra.mxu0 0.0
    %1077 = vmatprep.subr.mxu0 0.0
    %1078 = vmatpush2.msra.mxu0 0.0
    %1079 = vmatprep.subr.mxu0 0.0
    %1080 = vmatpush2.msra.mxu0 0.0
    %1081 = vmatprep.subr.mxu0 0.0
    %1082 = vmatpush2.msra.mxu0 0.0
    %1083 = vmatprep.subr.mxu0 0.0
    %1084 = vmatpush2.msra.mxu0 0.0
    %1085 = vmatprep.subr.mxu0 0.0
    %1086 = vmatpush2.msra.mxu0 0.0
    %1087 = vmatprep.subr.mxu0 0.0
    %1088 = vmatpush2.msra.mxu0 0.0
    %1089 = vmatprep.mubr.f32.mxu0 0.0
    %v1090 = vand.u32 %v746, 4294901760
    %v1091 = vsub.f32 %v746, %v1090
    %1092 = vmatmul.mubr.f32.gmra.mxu0 %v1091
    %v1093 = vpop.f32.mrf.mxu0
    %v1094 = vadd.f32 %v990, %v1093
    %v1095 = vpop.f32.mrf.mxu0
    %1096 = vdwg.mxu0
    %1097 = vmatprep.subr.mxu0 0.0
    %v1098 = vand.u32 %v63, 4294901760
    %1099 = vmatpush1.msra.mxu0 %v1098
    %1100 = vmatprep.subr.mxu0 0.0
    %v1101 = vand.u32 %v62, 4294901760
    %1102 = vmatpush1.msra.mxu0 %v1101
    %1103 = vmatprep.subr.mxu0 0.0
    %v1104 = vand.u32 %v61, 4294901760
    %1105 = vmatpush1.msra.mxu0 %v1104
    %1106 = vmatprep.subr.mxu0 0.0
    %v1107 = vand.u32 %v60, 4294901760
    %1108 = vmatpush1.msra.mxu0 %v1107
    %1109 = vmatprep.subr.mxu0 0.0
    %v1110 = vand.u32 %v59, 4294901760
    %1111 = vmatpush1.msra.mxu0 %v1110
    %1112 = vmatprep.subr.mxu0 0.0
    %v1113 = vand.u32 %v58, 4294901760
    %1114 = vmatpush1.msra.mxu0 %v1113
    %1115 = vmatprep.subr.mxu0 0.0
    %v1116 = vand.u32 %v57, 4294901760
    %1117 = vmatpush1.msra.mxu0 %v1116
    %1118 = vmatprep.subr.mxu0 0.0
    %v1119 = vand.u32 %v56, 4294901760
    %1120 = vmatpush1.msra.mxu0 %v1119
    %1121 = vmatprep.subr.mxu0 0.0
    %v1122 = vand.u32 %v55, 4294901760
    %1123 = vmatpush1.msra.mxu0 %v1122
    %1124 = vmatprep.subr.mxu0 0.0
    %v1125 = vand.u32 %v54, 4294901760
    %1126 = vmatpush1.msra.mxu0 %v1125
    %1127 = vmatprep.subr.mxu0 0.0
    %v1128 = vand.u32 %v53, 4294901760
    %1129 = vmatpush1.msra.mxu0 %v1128
    %1130 = vmatprep.subr.mxu0 0.0
    %v1131 = vand.u32 %v52, 4294901760
    %1132 = vmatpush1.msra.mxu0 %v1131
    %1133 = vmatprep.subr.mxu0 0.0
    %v1134 = vand.u32 %v51, 4294901760
    %1135 = vmatpush1.msra.mxu0 %v1134
    %1136 = vmatprep.subr.mxu0 0.0
    %v1137 = vand.u32 %v50, 4294901760
    %1138 = vmatpush1.msra.mxu0 %v1137
    %1139 = vmatprep.subr.mxu0 0.0
    %v1140 = vand.u32 %v49, 4294901760
    %1141 = vmatpush1.msra.mxu0 %v1140
    %1142 = vmatprep.subr.mxu0 0.0
    %v1143 = vand.u32 %v48, 4294901760
    %1144 = vmatpush1.msra.mxu0 %v1143
    %1145 = vmatprep.subr.mxu0 0.0
    %1146 = vmatpush2.msra.mxu0 0.0
    %1147 = vmatprep.subr.mxu0 0.0
    %1148 = vmatpush2.msra.mxu0 0.0
    %1149 = vmatprep.subr.mxu0 0.0
    %1150 = vmatpush2.msra.mxu0 0.0
    %1151 = vmatprep.subr.mxu0 0.0
    %1152 = vmatpush2.msra.mxu0 0.0
    %1153 = vmatprep.subr.mxu0 0.0
    %1154 = vmatpush2.msra.mxu0 0.0
    %1155 = vmatprep.subr.mxu0 0.0
    %1156 = vmatpush2.msra.mxu0 0.0
    %1157 = vmatprep.subr.mxu0 0.0
    %1158 = vmatpush2.msra.mxu0 0.0
    %1159 = vmatprep.subr.mxu0 0.0
    %1160 = vmatpush2.msra.mxu0 0.0
    %1161 = vmatprep.subr.mxu0 0.0
    %1162 = vmatpush2.msra.mxu0 0.0
    %1163 = vmatprep.subr.mxu0 0.0
    %1164 = vmatpush2.msra.mxu0 0.0
    %1165 = vmatprep.subr.mxu0 0.0
    %1166 = vmatpush2.msra.mxu0 0.0
    %1167 = vmatprep.subr.mxu0 0.0
    %1168 = vmatpush2.msra.mxu0 0.0
    %1169 = vmatprep.subr.mxu0 0.0
    %1170 = vmatpush2.msra.mxu0 0.0
    %1171 = vmatprep.subr.mxu0 0.0
    %1172 = vmatpush2.msra.mxu0 0.0
    %1173 = vmatprep.subr.mxu0 0.0
    %1174 = vmatpush2.msra.mxu0 0.0
    %1175 = vmatprep.subr.mxu0 0.0
    %1176 = vmatpush2.msra.mxu0 0.0
    %1177 = vmatprep.mubr.f32.mxu0 0.0
    %v1178 = vand.u32 %v746, 4294901760
    %v1179 = vsub.f32 %v746, %v1178
    %v1180 = vand.u32 %v1179, 4294901760
    %1181 = vmatmul.mubr.f32.gmra.mxu0 %v1180
    %v1182 = vpop.f32.mrf.mxu0
    %v1183 = vadd.f32 %v1094, %v1182
    %v1184 = vpop.f32.mrf.mxu0
    %1185 = vdwg.mxu0
    %1186 = vmatprep.subr.mxu0 0.0
    %v1187 = vand.u32 %v63, 4294901760
    %v1188 = vsub.f32 %v63, %v1187
    %v1189 = vand.u32 %v1188, 4294901760
    %1190 = vmatpush1.msra.mxu0 %v1189
    %1191 = vmatprep.subr.mxu0 0.0
    %v1192 = vand.u32 %v62, 4294901760
    %v1193 = vsub.f32 %v62, %v1192
    %v1194 = vand.u32 %v1193, 4294901760
    %1195 = vmatpush1.msra.mxu0 %v1194
    %1196 = vmatprep.subr.mxu0 0.0
    %v1197 = vand.u32 %v61, 4294901760
    %v1198 = vsub.f32 %v61, %v1197
    %v1199 = vand.u32 %v1198, 4294901760
    %1200 = vmatpush1.msra.mxu0 %v1199
    %1201 = vmatprep.subr.mxu0 0.0
    %v1202 = vand.u32 %v60, 4294901760
    %v1203 = vsub.f32 %v60, %v1202
    %v1204 = vand.u32 %v1203, 4294901760
    %1205 = vmatpush1.msra.mxu0 %v1204
    %1206 = vmatprep.subr.mxu0 0.0
    %v1207 = vand.u32 %v59, 4294901760
    %v1208 = vsub.f32 %v59, %v1207
    %v1209 = vand.u32 %v1208, 4294901760
    %1210 = vmatpush1.msra.mxu0 %v1209
    %1211 = vmatprep.subr.mxu0 0.0
    %v1212 = vand.u32 %v58, 4294901760
    %v1213 = vsub.f32 %v58, %v1212
    %v1214 = vand.u32 %v1213, 4294901760
    %1215 = vmatpush1.msra.mxu0 %v1214
    %1216 = vmatprep.subr.mxu0 0.0
    %v1217 = vand.u32 %v57, 4294901760
    %v1218 = vsub.f32 %v57, %v1217
    %v1219 = vand.u32 %v1218, 4294901760
    %1220 = vmatpush1.msra.mxu0 %v1219
    %1221 = vmatprep.subr.mxu0 0.0
    %v1222 = vand.u32 %v56, 4294901760
    %v1223 = vsub.f32 %v56, %v1222
    %v1224 = vand.u32 %v1223, 4294901760
    %1225 = vmatpush1.msra.mxu0 %v1224
    %1226 = vmatprep.subr.mxu0 0.0
    %v1227 = vand.u32 %v55, 4294901760
    %v1228 = vsub.f32 %v55, %v1227
    %v1229 = vand.u32 %v1228, 4294901760
    %1230 = vmatpush1.msra.mxu0 %v1229
    %1231 = vmatprep.subr.mxu0 0.0
    %v1232 = vand.u32 %v54, 4294901760
    %v1233 = vsub.f32 %v54, %v1232
    %v1234 = vand.u32 %v1233, 4294901760
    %1235 = vmatpush1.msra.mxu0 %v1234
    %1236 = vmatprep.subr.mxu0 0.0
    %v1237 = vand.u32 %v53, 4294901760
    %v1238 = vsub.f32 %v53, %v1237
    %v1239 = vand.u32 %v1238, 4294901760
    %1240 = vmatpush1.msra.mxu0 %v1239
    %1241 = vmatprep.subr.mxu0 0.0
    %v1242 = vand.u32 %v52, 4294901760
    %v1243 = vsub.f32 %v52, %v1242
    %v1244 = vand.u32 %v1243, 4294901760
    %1245 = vmatpush1.msra.mxu0 %v1244
    %1246 = vmatprep.subr.mxu0 0.0
    %v1247 = vand.u32 %v51, 4294901760
    %v1248 = vsub.f32 %v51, %v1247
    %v1249 = vand.u32 %v1248, 4294901760
    %1250 = vmatpush1.msra.mxu0 %v1249
    %1251 = vmatprep.subr.mxu0 0.0
    %v1252 = vand.u32 %v50, 4294901760
    %v1253 = vsub.f32 %v50, %v1252
    %v1254 = vand.u32 %v1253, 4294901760
    %1255 = vmatpush1.msra.mxu0 %v1254
    %1256 = vmatprep.subr.mxu0 0.0
    %v1257 = vand.u32 %v49, 4294901760
    %v1258 = vsub.f32 %v49, %v1257
    %v1259 = vand.u32 %v1258, 4294901760
    %1260 = vmatpush1.msra.mxu0 %v1259
    %1261 = vmatprep.subr.mxu0 0.0
    %v1262 = vand.u32 %v48, 4294901760
    %v1263 = vsub.f32 %v48, %v1262
    %v1264 = vand.u32 %v1263, 4294901760
    %1265 = vmatpush1.msra.mxu0 %v1264
    %1266 = vmatprep.subr.mxu0 0.0
    %1267 = vmatpush2.msra.mxu0 0.0
    %1268 = vmatprep.subr.mxu0 0.0
    %1269 = vmatpush2.msra.mxu0 0.0
    %1270 = vmatprep.subr.mxu0 0.0
    %1271 = vmatpush2.msra.mxu0 0.0
    %1272 = vmatprep.subr.mxu0 0.0
    %1273 = vmatpush2.msra.mxu0 0.0
    %1274 = vmatprep.subr.mxu0 0.0
    %1275 = vmatpush2.msra.mxu0 0.0
    %1276 = vmatprep.subr.mxu0 0.0
    %1277 = vmatpush2.msra.mxu0 0.0
    %1278 = vmatprep.subr.mxu0 0.0
    %1279 = vmatpush2.msra.mxu0 0.0
    %1280 = vmatprep.subr.mxu0 0.0
    %1281 = vmatpush2.msra.mxu0 0.0
    %1282 = vmatprep.subr.mxu0 0.0
    %1283 = vmatpush2.msra.mxu0 0.0
    %1284 = vmatprep.subr.mxu0 0.0
    %1285 = vmatpush2.msra.mxu0 0.0
    %1286 = vmatprep.subr.mxu0 0.0
    %1287 = vmatpush2.msra.mxu0 0.0
    %1288 = vmatprep.subr.mxu0 0.0
    %1289 = vmatpush2.msra.mxu0 0.0
    %1290 = vmatprep.subr.mxu0 0.0
    %1291 = vmatpush2.msra.mxu0 0.0
    %1292 = vmatprep.subr.mxu0 0.0
    %1293 = vmatpush2.msra.mxu0 0.0
    %1294 = vmatprep.subr.mxu0 0.0
    %1295 = vmatpush2.msra.mxu0 0.0
    %1296 = vmatprep.subr.mxu0 0.0
    %1297 = vmatpush2.msra.mxu0 0.0
    %1298 = vmatprep.mubr.f32.mxu0 0.0
    %v1299 = vand.u32 %v746, 4294901760
    %1300 = vmatmul.mubr.f32.gmra.mxu0 %v1299
    %v1301 = vpop.f32.mrf.mxu0
    %v1302 = vadd.f32 %v1183, %v1301
    %v1303 = vpop.f32.mrf.mxu0
    %1304 = vdwg.mxu0
    %1305 = vmatprep.subr.mxu0 0.0
    %v1306 = vand.u32 %v63, 4294901760
    %1307 = vmatpush1.msra.mxu0 %v1306
    %1308 = vmatprep.subr.mxu0 0.0
    %v1309 = vand.u32 %v62, 4294901760
    %1310 = vmatpush1.msra.mxu0 %v1309
    %1311 = vmatprep.subr.mxu0 0.0
    %v1312 = vand.u32 %v61, 4294901760
    %1313 = vmatpush1.msra.mxu0 %v1312
    %1314 = vmatprep.subr.mxu0 0.0
    %v1315 = vand.u32 %v60, 4294901760
    %1316 = vmatpush1.msra.mxu0 %v1315
    %1317 = vmatprep.subr.mxu0 0.0
    %v1318 = vand.u32 %v59, 4294901760
    %1319 = vmatpush1.msra.mxu0 %v1318
    %1320 = vmatprep.subr.mxu0 0.0
    %v1321 = vand.u32 %v58, 4294901760
    %1322 = vmatpush1.msra.mxu0 %v1321
    %1323 = vmatprep.subr.mxu0 0.0
    %v1324 = vand.u32 %v57, 4294901760
    %1325 = vmatpush1.msra.mxu0 %v1324
    %1326 = vmatprep.subr.mxu0 0.0
    %v1327 = vand.u32 %v56, 4294901760
    %1328 = vmatpush1.msra.mxu0 %v1327
    %1329 = vmatprep.subr.mxu0 0.0
    %v1330 = vand.u32 %v55, 4294901760
    %1331 = vmatpush1.msra.mxu0 %v1330
    %1332 = vmatprep.subr.mxu0 0.0
    %v1333 = vand.u32 %v54, 4294901760
    %1334 = vmatpush1.msra.mxu0 %v1333
    %1335 = vmatprep.subr.mxu0 0.0
    %v1336 = vand.u32 %v53, 4294901760
    %1337 = vmatpush1.msra.mxu0 %v1336
    %1338 = vmatprep.subr.mxu0 0.0
    %v1339 = vand.u32 %v52, 4294901760
    %1340 = vmatpush1.msra.mxu0 %v1339
    %1341 = vmatprep.subr.mxu0 0.0
    %v1342 = vand.u32 %v51, 4294901760
    %1343 = vmatpush1.msra.mxu0 %v1342
    %1344 = vmatprep.subr.mxu0 0.0
    %v1345 = vand.u32 %v50, 4294901760
    %1346 = vmatpush1.msra.mxu0 %v1345
    %1347 = vmatprep.subr.mxu0 0.0
    %v1348 = vand.u32 %v49, 4294901760
    %1349 = vmatpush1.msra.mxu0 %v1348
    %1350 = vmatprep.subr.mxu0 0.0
    %v1351 = vand.u32 %v48, 4294901760
    %1352 = vmatpush1.msra.mxu0 %v1351
    %1353 = vmatprep.subr.mxu0 0.0
    %1354 = vmatpush2.msra.mxu0 0.0
    %1355 = vmatprep.subr.mxu0 0.0
    %1356 = vmatpush2.msra.mxu0 0.0
    %1357 = vmatprep.subr.mxu0 0.0
    %1358 = vmatpush2.msra.mxu0 0.0
    %1359 = vmatprep.subr.mxu0 0.0
    %1360 = vmatpush2.msra.mxu0 0.0
    %1361 = vmatprep.subr.mxu0 0.0
    %1362 = vmatpush2.msra.mxu0 0.0
    %1363 = vmatprep.subr.mxu0 0.0
    %1364 = vmatpush2.msra.mxu0 0.0
    %1365 = vmatprep.subr.mxu0 0.0
    %1366 = vmatpush2.msra.mxu0 0.0
    %1367 = vmatprep.subr.mxu0 0.0
    %1368 = vmatpush2.msra.mxu0 0.0
    %1369 = vmatprep.subr.mxu0 0.0
    %1370 = vmatpush2.msra.mxu0 0.0
    %1371 = vmatprep.subr.mxu0 0.0
    %1372 = vmatpush2.msra.mxu0 0.0
    %1373 = vmatprep.subr.mxu0 0.0
    %1374 = vmatpush2.msra.mxu0 0.0
    %1375 = vmatprep.subr.mxu0 0.0
    %1376 = vmatpush2.msra.mxu0 0.0
    %1377 = vmatprep.subr.mxu0 0.0
    %1378 = vmatpush2.msra.mxu0 0.0
    %1379 = vmatprep.subr.mxu0 0.0
    %1380 = vmatpush2.msra.mxu0 0.0
    %1381 = vmatprep.subr.mxu0 0.0
    %1382 = vmatpush2.msra.mxu0 0.0
    %1383 = vmatprep.subr.mxu0 0.0
    %1384 = vmatpush2.msra.mxu0 0.0
    %1385 = vmatprep.mubr.f32.mxu0 0.0
    %v1386 = vand.u32 %v746, 4294901760
    %1387 = vmatmul.mubr.f32.gmra.mxu0 %v1386
    %v1388 = vpop.f32.mrf.mxu0
    %v1389 = vadd.f32 %v1302, %v1388
    %v1390 = vpop.f32.mrf.mxu0
    %1391 = vdwg.mxu0
    %1393 = vset.pattern.permute.xlu0 1
    %1394 = vperm.xlu0 %1393, %v723
    %v1395 = vpop.permute.xlu0 %1394
    %v1397 = vlaneseq
    %v1398 = vshrl.u32 %v1397, 7
    %v1399 = vsub.s32 2, %v1398
    %v1400 = vrot.slane %v47, %v1399
    %v1401 = vmul.f32 %v1395, %v1400
    %v1402 = vadd.f32 %v1389, %v1401
    %v1403 = vlaneseq
    %v1404 = vshrl.u32 %v1403, 7
    %v1405 = vsub.s32 3, %v1404
    %v1406 = vrot.slane %v47, %v1405
    %v1407 = vadd.f32 %v1402, %v1406
    %1408 = vadd.xlane.f32.xlu0 %v1407
    %v1409 = vpop.xlane.xlu0 %1408
    %v1410 = vrcp.pop 128.0
    %v1411 = vmul.f32 %v1409, %v1410
    %v1412 = vsub.f32 %v1407, %v1411
    %v1413 = vmul.f32 %v1412, %v1412
    %1414 = vadd.xlane.f32.xlu0 %v1413
    %v1415 = vpop.xlane.xlu0 %1414
    %v1416 = vmul.f32 %v1415, %v1410
    %v1417 = vadd.f32 %v1416, 1e-05
    %v1418 = vrsqrt.pop %v1417
    %v1419 = vmul.f32 %v1412, %v1418
    %v1420 = vlaneseq
    %v1421 = vshrl.u32 %v1420, 7
    %v1422 = vsub.s32 4, %v1421
    %v1423 = vrot.slane %v47, %v1422
    %v1424 = vmul.f32 %v1419, %v1423
    %v1425 = vlaneseq
    %v1426 = vshrl.u32 %v1425, 7
    %v1427 = vsub.s32 5, %v1426
    %v1428 = vrot.slane %v47, %v1427
    %v1429 = vadd.f32 %v1424, %v1428
    %v1430 = vadd.f32 %v1429, 1e-08
    %1431 = vst [vmem:[#allocation7] sm:$0xff] %v1430
    %s1432 = scalar_lea.vmem %s0, 8
    %v1433 = vld [vmem:[%s1432] sm:$0xff]
    %s1434 = scalar_lea.vmem %s1, 8
    %v1435 = vld [vmem:[%s1434] sm:$0xff]
    %v1436 = vmul.f32 %v1435, 0.999995
    %1438 = vset.pattern.permute.xlu0 0
    %1439 = vperm.xlu0 %1438, %v1436
    %v1440 = vpop.permute.xlu0 %1439
    %v1442 = vmul.f32 %v1440, %v733
    %v1443 = vadd.f32 %v1442, %v738
    %vm1444 = vcmp.ne.f32.partialorder %v1435, %v1435
    %v1445 = vsel %vm1444, 1, 0
    %1446 = vset.pattern.permute.xlu0 0
    %1447 = vperm.xlu0 %1446, %v1445
    %v1448 = vpop.permute.xlu0 %1447
    %vm1449 = vcmp.eq.s32.totalorder %v1448, 1
    %v1450 = vsel %vm1449, %v1433, %v1443
    %v1451 = vlaneseq
    %v1452 = vshrl.u32 %v1451, 7
    %v1453 = vsub.s32 1, %v1452
    %v1454 = vrot.slane %v719, %v1453
    %1455 = vmatprep.subr.mxu0 0.0
    %v1456 = vand.u32 %v63, 4294901760
    %1457 = vmatpush1.msra.mxu0 %v1456
    %1458 = vmatprep.subr.mxu0 0.0
    %v1459 = vand.u32 %v62, 4294901760
    %1460 = vmatpush1.msra.mxu0 %v1459
    %1461 = vmatprep.subr.mxu0 0.0
    %v1462 = vand.u32 %v61, 4294901760
    %1463 = vmatpush1.msra.mxu0 %v1462
    %1464 = vmatprep.subr.mxu0 0.0
    %v1465 = vand.u32 %v60, 4294901760
    %1466 = vmatpush1.msra.mxu0 %v1465
    %1467 = vmatprep.subr.mxu0 0.0
    %v1468 = vand.u32 %v59, 4294901760
    %1469 = vmatpush1.msra.mxu0 %v1468
    %1470 = vmatprep.subr.mxu0 0.0
    %v1471 = vand.u32 %v58, 4294901760
    %1472 = vmatpush1.msra.mxu0 %v1471
    %1473 = vmatprep.subr.mxu0 0.0
    %v1474 = vand.u32 %v57, 4294901760
    %1475 = vmatpush1.msra.mxu0 %v1474
    %1476 = vmatprep.subr.mxu0 0.0
    %v1477 = vand.u32 %v56, 4294901760
    %1478 = vmatpush1.msra.mxu0 %v1477
    %1479 = vmatprep.subr.mxu0 0.0
    %v1480 = vand.u32 %v55, 4294901760
    %1481 = vmatpush1.msra.mxu0 %v1480
    %1482 = vmatprep.subr.mxu0 0.0
    %v1483 = vand.u32 %v54, 4294901760
    %1484 = vmatpush1.msra.mxu0 %v1483
    %1485 = vmatprep.subr.mxu0 0.0
    %v1486 = vand.u32 %v53, 4294901760
    %1487 = vmatpush1.msra.mxu0 %v1486
    %1488 = vmatprep.subr.mxu0 0.0
    %v1489 = vand.u32 %v52, 4294901760
    %1490 = vmatpush1.msra.mxu0 %v1489
    %1491 = vmatprep.subr.mxu0 0.0
    %v1492 = vand.u32 %v51, 4294901760
    %1493 = vmatpush1.msra.mxu0 %v1492
    %1494 = vmatprep.subr.mxu0 0.0
    %v1495 = vand.u32 %v50, 4294901760
    %1496 = vmatpush1.msra.mxu0 %v1495
    %1497 = vmatprep.subr.mxu0 0.0
    %v1498 = vand.u32 %v49, 4294901760
    %1499 = vmatpush1.msra.mxu0 %v1498
    %1500 = vmatprep.subr.mxu0 0.0
    %v1501 = vand.u32 %v48, 4294901760
    %1502 = vmatpush1.msra.mxu0 %v1501
    %1503 = vmatprep.subr.mxu0 0.0
    %1504 = vmatpush2.msra.mxu0 0.0
    %1505 = vmatprep.subr.mxu0 0.0
    %1506 = vmatpush2.msra.mxu0 0.0
    %1507 = vmatprep.subr.mxu0 0.0
    %1508 = vmatpush2.msra.mxu0 0.0
    %1509 = vmatprep.subr.mxu0 0.0
    %1510 = vmatpush2.msra.mxu0 0.0
    %1511 = vmatprep.subr.mxu0 0.0
    %1512 = vmatpush2.msra.mxu0 0.0
    %1513 = vmatprep.subr.mxu0 0.0
    %1514 = vmatpush2.msra.mxu0 0.0
    %1515 = vmatprep.subr.mxu0 0.0
    %1516 = vmatpush2.msra.mxu0 0.0
    %1517 = vmatprep.subr.mxu0 0.0
    %1518 = vmatpush2.msra.mxu0 0.0
    %1519 = vmatprep.subr.mxu0 0.0
    %1520 = vmatpush2.msra.mxu0 0.0
    %1521 = vmatprep.subr.mxu0 0.0
    %1522 = vmatpush2.msra.mxu0 0.0
    %1523 = vmatprep.subr.mxu0 0.0
    %1524 = vmatpush2.msra.mxu0 0.0
    %1525 = vmatprep.subr.mxu0 0.0
    %1526 = vmatpush2.msra.mxu0 0.0
    %1527 = vmatprep.subr.mxu0 0.0
    %1528 = vmatpush2.msra.mxu0 0.0
    %1529 = vmatprep.subr.mxu0 0.0
    %1530 = vmatpush2.msra.mxu0 0.0
    %1531 = vmatprep.subr.mxu0 0.0
    %1532 = vmatpush2.msra.mxu0 0.0
    %1533 = vmatprep.subr.mxu0 0.0
    %1534 = vmatpush2.msra.mxu0 0.0
    %1535 = vmatprep.mubr.f32.mxu0 0.0
    %v1536 = vand.u32 %v1450, 4294901760
    %v1537 = vsub.f32 %v1450, %v1536
    %v1538 = vand.u32 %v1537, 4294901760
    %v1539 = vsub.f32 %v1537, %v1538
    %v1540 = vand.u32 %v1539, 4294901760
    %1541 = vmatmul.mubr.f32.gmra.mxu0 %v1540
    %v1542 = vpop.f32.mrf.mxu0
    %v1543 = vadd.f32 %v1454, %v1542
    %v1544 = vpop.f32.mrf.mxu0
    %1545 = vdwg.mxu0
    %1546 = vmatprep.subr.mxu0 0.0
    %v1547 = vand.u32 %v63, 4294901760
    %v1548 = vsub.f32 %v63, %v1547
    %v1549 = vand.u32 %v1548, 4294901760
    %v1550 = vsub.f32 %v1548, %v1549
    %v1551 = vand.u32 %v1550, 4294901760
    %1552 = vmatpush1.msra.mxu0 %v1551
    %1553 = vmatprep.subr.mxu0 0.0
    %v1554 = vand.u32 %v62, 4294901760
    %v1555 = vsub.f32 %v62, %v1554
    %v1556 = vand.u32 %v1555, 4294901760
    %v1557 = vsub.f32 %v1555, %v1556
    %v1558 = vand.u32 %v1557, 4294901760
    %1559 = vmatpush1.msra.mxu0 %v1558
    %1560 = vmatprep.subr.mxu0 0.0
    %v1561 = vand.u32 %v61, 4294901760
    %v1562 = vsub.f32 %v61, %v1561
    %v1563 = vand.u32 %v1562, 4294901760
    %v1564 = vsub.f32 %v1562, %v1563
    %v1565 = vand.u32 %v1564, 4294901760
    %1566 = vmatpush1.msra.mxu0 %v1565
    %1567 = vmatprep.subr.mxu0 0.0
    %v1568 = vand.u32 %v60, 4294901760
    %v1569 = vsub.f32 %v60, %v1568
    %v1570 = vand.u32 %v1569, 4294901760
    %v1571 = vsub.f32 %v1569, %v1570
    %v1572 = vand.u32 %v1571, 4294901760
    %1573 = vmatpush1.msra.mxu0 %v1572
    %1574 = vmatprep.subr.mxu0 0.0
    %v1575 = vand.u32 %v59, 4294901760
    %v1576 = vsub.f32 %v59, %v1575
    %v1577 = vand.u32 %v1576, 4294901760
    %v1578 = vsub.f32 %v1576, %v1577
    %v1579 = vand.u32 %v1578, 4294901760
    %1580 = vmatpush1.msra.mxu0 %v1579
    %1581 = vmatprep.subr.mxu0 0.0
    %v1582 = vand.u32 %v58, 4294901760
    %v1583 = vsub.f32 %v58, %v1582
    %v1584 = vand.u32 %v1583, 4294901760
    %v1585 = vsub.f32 %v1583, %v1584
    %v1586 = vand.u32 %v1585, 4294901760
    %1587 = vmatpush1.msra.mxu0 %v1586
    %1588 = vmatprep.subr.mxu0 0.0
    %v1589 = vand.u32 %v57, 4294901760
    %v1590 = vsub.f32 %v57, %v1589
    %v1591 = vand.u32 %v1590, 4294901760
    %v1592 = vsub.f32 %v1590, %v1591
    %v1593 = vand.u32 %v1592, 4294901760
    %1594 = vmatpush1.msra.mxu0 %v1593
    %1595 = vmatprep.subr.mxu0 0.0
    %v1596 = vand.u32 %v56, 4294901760
    %v1597 = vsub.f32 %v56, %v1596
    %v1598 = vand.u32 %v1597, 4294901760
    %v1599 = vsub.f32 %v1597, %v1598
    %v1600 = vand.u32 %v1599, 4294901760
    %1601 = vmatpush1.msra.mxu0 %v1600
    %1602 = vmatprep.subr.mxu0 0.0
    %v1603 = vand.u32 %v55, 4294901760
    %v1604 = vsub.f32 %v55, %v1603
    %v1605 = vand.u32 %v1604, 4294901760
    %v1606 = vsub.f32 %v1604, %v1605
    %v1607 = vand.u32 %v1606, 4294901760
    %1608 = vmatpush1.msra.mxu0 %v1607
    %1609 = vmatprep.subr.mxu0 0.0
    %v1610 = vand.u32 %v54, 4294901760
    %v1611 = vsub.f32 %v54, %v1610
    %v1612 = vand.u32 %v1611, 4294901760
    %v1613 = vsub.f32 %v1611, %v1612
    %v1614 = vand.u32 %v1613, 4294901760
    %1615 = vmatpush1.msra.mxu0 %v1614
    %1616 = vmatprep.subr.mxu0 0.0
    %v1617 = vand.u32 %v53, 4294901760
    %v1618 = vsub.f32 %v53, %v1617
    %v1619 = vand.u32 %v1618, 4294901760
    %v1620 = vsub.f32 %v1618, %v1619
    %v1621 = vand.u32 %v1620, 4294901760
    %1622 = vmatpush1.msra.mxu0 %v1621
    %1623 = vmatprep.subr.mxu0 0.0
    %v1624 = vand.u32 %v52, 4294901760
    %v1625 = vsub.f32 %v52, %v1624
    %v1626 = vand.u32 %v1625, 4294901760
    %v1627 = vsub.f32 %v1625, %v1626
    %v1628 = vand.u32 %v1627, 4294901760
    %1629 = vmatpush1.msra.mxu0 %v1628
    %1630 = vmatprep.subr.mxu0 0.0
    %v1631 = vand.u32 %v51, 4294901760
    %v1632 = vsub.f32 %v51, %v1631
    %v1633 = vand.u32 %v1632, 4294901760
    %v1634 = vsub.f32 %v1632, %v1633
    %v1635 = vand.u32 %v1634, 4294901760
    %1636 = vmatpush1.msra.mxu0 %v1635
    %1637 = vmatprep.subr.mxu0 0.0
    %v1638 = vand.u32 %v50, 4294901760
    %v1639 = vsub.f32 %v50, %v1638
    %v1640 = vand.u32 %v1639, 4294901760
    %v1641 = vsub.f32 %v1639, %v1640
    %v1642 = vand.u32 %v1641, 4294901760
    %1643 = vmatpush1.msra.mxu0 %v1642
    %1644 = vmatprep.subr.mxu0 0.0
    %v1645 = vand.u32 %v49, 4294901760
    %v1646 = vsub.f32 %v49, %v1645
    %v1647 = vand.u32 %v1646, 4294901760
    %v1648 = vsub.f32 %v1646, %v1647
    %v1649 = vand.u32 %v1648, 4294901760
    %1650 = vmatpush1.msra.mxu0 %v1649
    %1651 = vmatprep.subr.mxu0 0.0
    %v1652 = vand.u32 %v48, 4294901760
    %v1653 = vsub.f32 %v48, %v1652
    %v1654 = vand.u32 %v1653, 4294901760
    %v1655 = vsub.f32 %v1653, %v1654
    %v1656 = vand.u32 %v1655, 4294901760
    %1657 = vmatpush1.msra.mxu0 %v1656
    %1658 = vmatprep.subr.mxu0 0.0
    %1659 = vmatpush2.msra.mxu0 0.0
    %1660 = vmatprep.subr.mxu0 0.0
    %1661 = vmatpush2.msra.mxu0 0.0
    %1662 = vmatprep.subr.mxu0 0.0
    %1663 = vmatpush2.msra.mxu0 0.0
    %1664 = vmatprep.subr.mxu0 0.0
    %1665 = vmatpush2.msra.mxu0 0.0
    %1666 = vmatprep.subr.mxu0 0.0
    %1667 = vmatpush2.msra.mxu0 0.0
    %1668 = vmatprep.subr.mxu0 0.0
    %1669 = vmatpush2.msra.mxu0 0.0
    %1670 = vmatprep.subr.mxu0 0.0
    %1671 = vmatpush2.msra.mxu0 0.0
    %1672 = vmatprep.subr.mxu0 0.0
    %1673 = vmatpush2.msra.mxu0 0.0
    %1674 = vmatprep.subr.mxu0 0.0
    %1675 = vmatpush2.msra.mxu0 0.0
    %1676 = vmatprep.subr.mxu0 0.0
    %1677 = vmatpush2.msra.mxu0 0.0
    %1678 = vmatprep.subr.mxu0 0.0
    %1679 = vmatpush2.msra.mxu0 0.0
    %1680 = vmatprep.subr.mxu0 0.0
    %1681 = vmatpush2.msra.mxu0 0.0
    %1682 = vmatprep.subr.mxu0 0.0
    %1683 = vmatpush2.msra.mxu0 0.0
    %1684 = vmatprep.subr.mxu0 0.0
    %1685 = vmatpush2.msra.mxu0 0.0
    %1686 = vmatprep.subr.mxu0 0.0
    %1687 = vmatpush2.msra.mxu0 0.0
    %1688 = vmatprep.subr.mxu0 0.0
    %1689 = vmatpush2.msra.mxu0 0.0
    %1690 = vmatprep.mubr.f32.mxu0 0.0
    %v1691 = vand.u32 %v1450, 4294901760
    %1692 = vmatmul.mubr.f32.gmra.mxu0 %v1691
    %v1693 = vpop.f32.mrf.mxu0
    %v1694 = vadd.f32 %v1543, %v1693
    %v1695 = vpop.f32.mrf.mxu0
    %1696 = vdwg.mxu0
    %1697 = vmatprep.subr.mxu0 0.0
    %v1698 = vand.u32 %v63, 4294901760
    %v1699 = vsub.f32 %v63, %v1698
    %1700 = vmatpush1.msra.mxu0 %v1699
    %1701 = vmatprep.subr.mxu0 0.0
    %v1702 = vand.u32 %v62, 4294901760
    %v1703 = vsub.f32 %v62, %v1702
    %1704 = vmatpush1.msra.mxu0 %v1703
    %1705 = vmatprep.subr.mxu0 0.0
    %v1706 = vand.u32 %v61, 4294901760
    %v1707 = vsub.f32 %v61, %v1706
    %1708 = vmatpush1.msra.mxu0 %v1707
    %1709 = vmatprep.subr.mxu0 0.0
    %v1710 = vand.u32 %v60, 4294901760
    %v1711 = vsub.f32 %v60, %v1710
    %1712 = vmatpush1.msra.mxu0 %v1711
    %1713 = vmatprep.subr.mxu0 0.0
    %v1714 = vand.u32 %v59, 4294901760
    %v1715 = vsub.f32 %v59, %v1714
    %1716 = vmatpush1.msra.mxu0 %v1715
    %1717 = vmatprep.subr.mxu0 0.0
    %v1718 = vand.u32 %v58, 4294901760
    %v1719 = vsub.f32 %v58, %v1718
    %1720 = vmatpush1.msra.mxu0 %v1719
    %1721 = vmatprep.subr.mxu0 0.0
    %v1722 = vand.u32 %v57, 4294901760
    %v1723 = vsub.f32 %v57, %v1722
    %1724 = vmatpush1.msra.mxu0 %v1723
    %1725 = vmatprep.subr.mxu0 0.0
    %v1726 = vand.u32 %v56, 4294901760
    %v1727 = vsub.f32 %v56, %v1726
    %1728 = vmatpush1.msra.mxu0 %v1727
    %1729 = vmatprep.subr.mxu0 0.0
    %v1730 = vand.u32 %v55, 4294901760
    %v1731 = vsub.f32 %v55, %v1730
    %1732 = vmatpush1.msra.mxu0 %v1731
    %1733 = vmatprep.subr.mxu0 0.0
    %v1734 = vand.u32 %v54, 4294901760
    %v1735 = vsub.f32 %v54, %v1734
    %1736 = vmatpush1.msra.mxu0 %v1735
    %1737 = vmatprep.subr.mxu0 0.0
    %v1738 = vand.u32 %v53, 4294901760
    %v1739 = vsub.f32 %v53, %v1738
    %1740 = vmatpush1.msra.mxu0 %v1739
    %1741 = vmatprep.subr.mxu0 0.0
    %v1742 = vand.u32 %v52, 4294901760
    %v1743 = vsub.f32 %v52, %v1742
    %1744 = vmatpush1.msra.mxu0 %v1743
    %1745 = vmatprep.subr.mxu0 0.0
    %v1746 = vand.u32 %v51, 4294901760
    %v1747 = vsub.f32 %v51, %v1746
    %1748 = vmatpush1.msra.mxu0 %v1747
    %1749 = vmatprep.subr.mxu0 0.0
    %v1750 = vand.u32 %v50, 4294901760
    %v1751 = vsub.f32 %v50, %v1750
    %1752 = vmatpush1.msra.mxu0 %v1751
    %1753 = vmatprep.subr.mxu0 0.0
    %v1754 = vand.u32 %v49, 4294901760
    %v1755 = vsub.f32 %v49, %v1754
    %1756 = vmatpush1.msra.mxu0 %v1755
    %1757 = vmatprep.subr.mxu0 0.0
    %v1758 = vand.u32 %v48, 4294901760
    %v1759 = vsub.f32 %v48, %v1758
    %1760 = vmatpush1.msra.mxu0 %v1759
    %1761 = vmatprep.subr.mxu0 0.0
    %1762 = vmatpush2.msra.mxu0 0.0
    %1763 = vmatprep.subr.mxu0 0.0
    %1764 = vmatpush2.msra.mxu0 0.0
    %1765 = vmatprep.subr.mxu0 0.0
    %1766 = vmatpush2.msra.mxu0 0.0
    %1767 = vmatprep.subr.mxu0 0.0
    %1768 = vmatpush2.msra.mxu0 0.0
    %1769 = vmatprep.subr.mxu0 0.0
    %1770 = vmatpush2.msra.mxu0 0.0
    %1771 = vmatprep.subr.mxu0 0.0
    %1772 = vmatpush2.msra.mxu0 0.0
    %1773 = vmatprep.subr.mxu0 0.0
    %1774 = vmatpush2.msra.mxu0 0.0
    %1775 = vmatprep.subr.mxu0 0.0
    %1776 = vmatpush2.msra.mxu0 0.0
    %1777 = vmatprep.subr.mxu0 0.0
    %1778 = vmatpush2.msra.mxu0 0.0
    %1779 = vmatprep.subr.mxu0 0.0
    %1780 = vmatpush2.msra.mxu0 0.0
    %1781 = vmatprep.subr.mxu0 0.0
    %1782 = vmatpush2.msra.mxu0 0.0
    %1783 = vmatprep.subr.mxu0 0.0
    %1784 = vmatpush2.msra.mxu0 0.0
    %1785 = vmatprep.subr.mxu0 0.0
    %1786 = vmatpush2.msra.mxu0 0.0
    %1787 = vmatprep.subr.mxu0 0.0
    %1788 = vmatpush2.msra.mxu0 0.0
    %1789 = vmatprep.subr.mxu0 0.0
    %1790 = vmatpush2.msra.mxu0 0.0
    %1791 = vmatprep.subr.mxu0 0.0
    %1792 = vmatpush2.msra.mxu0 0.0
    %1793 = vmatprep.mubr.f32.mxu0 0.0
    %v1794 = vand.u32 %v1450, 4294901760
    %v1795 = vsub.f32 %v1450, %v1794
    %1796 = vmatmul.mubr.f32.gmra.mxu0 %v1795
    %v1797 = vpop.f32.mrf.mxu0
    %v1798 = vadd.f32 %v1694, %v1797
    %v1799 = vpop.f32.mrf.mxu0
    %1800 = vdwg.mxu0
    %1801 = vmatprep.subr.mxu0 0.0
    %v1802 = vand.u32 %v63, 4294901760
    %1803 = vmatpush1.msra.mxu0 %v1802
    %1804 = vmatprep.subr.mxu0 0.0
    %v1805 = vand.u32 %v62, 4294901760
    %1806 = vmatpush1.msra.mxu0 %v1805
    %1807 = vmatprep.subr.mxu0 0.0
    %v1808 = vand.u32 %v61, 4294901760
    %1809 = vmatpush1.msra.mxu0 %v1808
    %1810 = vmatprep.subr.mxu0 0.0
    %v1811 = vand.u32 %v60, 4294901760
    %1812 = vmatpush1.msra.mxu0 %v1811
    %1813 = vmatprep.subr.mxu0 0.0
    %v1814 = vand.u32 %v59, 4294901760
    %1815 = vmatpush1.msra.mxu0 %v1814
    %1816 = vmatprep.subr.mxu0 0.0
    %v1817 = vand.u32 %v58, 4294901760
    %1818 = vmatpush1.msra.mxu0 %v1817
    %1819 = vmatprep.subr.mxu0 0.0
    %v1820 = vand.u32 %v57, 4294901760
    %1821 = vmatpush1.msra.mxu0 %v1820
    %1822 = vmatprep.subr.mxu0 0.0
    %v1823 = vand.u32 %v56, 4294901760
    %1824 = vmatpush1.msra.mxu0 %v1823
    %1825 = vmatprep.subr.mxu0 0.0
    %v1826 = vand.u32 %v55, 4294901760
    %1827 = vmatpush1.msra.mxu0 %v1826
    %1828 = vmatprep.subr.mxu0 0.0
    %v1829 = vand.u32 %v54, 4294901760
    %1830 = vmatpush1.msra.mxu0 %v1829
    %1831 = vmatprep.subr.mxu0 0.0
    %v1832 = vand.u32 %v53, 4294901760
    %1833 = vmatpush1.msra.mxu0 %v1832
    %1834 = vmatprep.subr.mxu0 0.0
    %v1835 = vand.u32 %v52, 4294901760
    %1836 = vmatpush1.msra.mxu0 %v1835
    %1837 = vmatprep.subr.mxu0 0.0
    %v1838 = vand.u32 %v51, 4294901760
    %1839 = vmatpush1.msra.mxu0 %v1838
    %1840 = vmatprep.subr.mxu0 0.0
    %v1841 = vand.u32 %v50, 4294901760
    %1842 = vmatpush1.msra.mxu0 %v1841
    %1843 = vmatprep.subr.mxu0 0.0
    %v1844 = vand.u32 %v49, 4294901760
    %1845 = vmatpush1.msra.mxu0 %v1844
    %1846 = vmatprep.subr.mxu0 0.0
    %v1847 = vand.u32 %v48, 4294901760
    %1848 = vmatpush1.msra.mxu0 %v1847
    %1849 = vmatprep.subr.mxu0 0.0
    %1850 = vmatpush2.msra.mxu0 0.0
    %1851 = vmatprep.subr.mxu0 0.0
    %1852 = vmatpush2.msra.mxu0 0.0
    %1853 = vmatprep.subr.mxu0 0.0
    %1854 = vmatpush2.msra.mxu0 0.0
    %1855 = vmatprep.subr.mxu0 0.0
    %1856 = vmatpush2.msra.mxu0 0.0
    %1857 = vmatprep.subr.mxu0 0.0
    %1858 = vmatpush2.msra.mxu0 0.0
    %1859 = vmatprep.subr.mxu0 0.0
    %1860 = vmatpush2.msra.mxu0 0.0
    %1861 = vmatprep.subr.mxu0 0.0
    %1862 = vmatpush2.msra.mxu0 0.0
    %1863 = vmatprep.subr.mxu0 0.0
    %1864 = vmatpush2.msra.mxu0 0.0
    %1865 = vmatprep.subr.mxu0 0.0
    %1866 = vmatpush2.msra.mxu0 0.0
    %1867 = vmatprep.subr.mxu0 0.0
    %1868 = vmatpush2.msra.mxu0 0.0
    %1869 = vmatprep.subr.mxu0 0.0
    %1870 = vmatpush2.msra.mxu0 0.0
    %1871 = vmatprep.subr.mxu0 0.0
    %1872 = vmatpush2.msra.mxu0 0.0
    %1873 = vmatprep.subr.mxu0 0.0
    %1874 = vmatpush2.msra.mxu0 0.0
    %1875 = vmatprep.subr.mxu0 0.0
    %1876 = vmatpush2.msra.mxu0 0.0
    %1877 = vmatprep.subr.mxu0 0.0
    %1878 = vmatpush2.msra.mxu0 0.0
    %1879 = vmatprep.subr.mxu0 0.0
    %1880 = vmatpush2.msra.mxu0 0.0
    %1881 = vmatprep.mubr.f32.mxu0 0.0
    %v1882 = vand.u32 %v1450, 4294901760
    %v1883 = vsub.f32 %v1450, %v1882
    %v1884 = vand.u32 %v1883, 4294901760
    %1885 = vmatmul.mubr.f32.gmra.mxu0 %v1884
    %v1886 = vpop.f32.mrf.mxu0
    %v1887 = vadd.f32 %v1798, %v1886
    %v1888 = vpop.f32.mrf.mxu0
    %1889 = vdwg.mxu0
    %1890 = vmatprep.subr.mxu0 0.0
    %v1891 = vand.u32 %v63, 4294901760
    %v1892 = vsub.f32 %v63, %v1891
    %v1893 = vand.u32 %v1892, 4294901760
    %1894 = vmatpush1.msra.mxu0 %v1893
    %1895 = vmatprep.subr.mxu0 0.0
    %v1896 = vand.u32 %v62, 4294901760
    %v1897 = vsub.f32 %v62, %v1896
    %v1898 = vand.u32 %v1897, 4294901760
    %1899 = vmatpush1.msra.mxu0 %v1898
    %1900 = vmatprep.subr.mxu0 0.0
    %v1901 = vand.u32 %v61, 4294901760
    %v1902 = vsub.f32 %v61, %v1901
    %v1903 = vand.u32 %v1902, 4294901760
    %1904 = vmatpush1.msra.mxu0 %v1903
    %1905 = vmatprep.subr.mxu0 0.0
    %v1906 = vand.u32 %v60, 4294901760
    %v1907 = vsub.f32 %v60, %v1906
    %v1908 = vand.u32 %v1907, 4294901760
    %1909 = vmatpush1.msra.mxu0 %v1908
    %1910 = vmatprep.subr.mxu0 0.0
    %v1911 = vand.u32 %v59, 4294901760
    %v1912 = vsub.f32 %v59, %v1911
    %v1913 = vand.u32 %v1912, 4294901760
    %1914 = vmatpush1.msra.mxu0 %v1913
    %1915 = vmatprep.subr.mxu0 0.0
    %v1916 = vand.u32 %v58, 4294901760
    %v1917 = vsub.f32 %v58, %v1916
    %v1918 = vand.u32 %v1917, 4294901760
    %1919 = vmatpush1.msra.mxu0 %v1918
    %1920 = vmatprep.subr.mxu0 0.0
    %v1921 = vand.u32 %v57, 4294901760
    %v1922 = vsub.f32 %v57, %v1921
    %v1923 = vand.u32 %v1922, 4294901760
    %1924 = vmatpush1.msra.mxu0 %v1923
    %1925 = vmatprep.subr.mxu0 0.0
    %v1926 = vand.u32 %v56, 4294901760
    %v1927 = vsub.f32 %v56, %v1926
    %v1928 = vand.u32 %v1927, 4294901760
    %1929 = vmatpush1.msra.mxu0 %v1928
    %1930 = vmatprep.subr.mxu0 0.0
    %v1931 = vand.u32 %v55, 4294901760
    %v1932 = vsub.f32 %v55, %v1931
    %v1933 = vand.u32 %v1932, 4294901760
    %1934 = vmatpush1.msra.mxu0 %v1933
    %1935 = vmatprep.subr.mxu0 0.0
    %v1936 = vand.u32 %v54, 4294901760
    %v1937 = vsub.f32 %v54, %v1936
    %v1938 = vand.u32 %v1937, 4294901760
    %1939 = vmatpush1.msra.mxu0 %v1938
    %1940 = vmatprep.subr.mxu0 0.0
    %v1941 = vand.u32 %v53, 4294901760
    %v1942 = vsub.f32 %v53, %v1941
    %v1943 = vand.u32 %v1942, 4294901760
    %1944 = vmatpush1.msra.mxu0 %v1943
    %1945 = vmatprep.subr.mxu0 0.0
    %v1946 = vand.u32 %v52, 4294901760
    %v1947 = vsub.f32 %v52, %v1946
    %v1948 = vand.u32 %v1947, 4294901760
    %1949 = vmatpush1.msra.mxu0 %v1948
    %1950 = vmatprep.subr.mxu0 0.0
    %v1951 = vand.u32 %v51, 4294901760
    %v1952 = vsub.f32 %v51, %v1951
    %v1953 = vand.u32 %v1952, 4294901760
    %1954 = vmatpush1.msra.mxu0 %v1953
    %1955 = vmatprep.subr.mxu0 0.0
    %v1956 = vand.u32 %v50, 4294901760
    %v1957 = vsub.f32 %v50, %v1956
    %v1958 = vand.u32 %v1957, 4294901760
    %1959 = vmatpush1.msra.mxu0 %v1958
    %1960 = vmatprep.subr.mxu0 0.0
    %v1961 = vand.u32 %v49, 4294901760
    %v1962 = vsub.f32 %v49, %v1961
    %v1963 = vand.u32 %v1962, 4294901760
    %1964 = vmatpush1.msra.mxu0 %v1963
    %1965 = vmatprep.subr.mxu0 0.0
    %v1966 = vand.u32 %v48, 4294901760
    %v1967 = vsub.f32 %v48, %v1966
    %v1968 = vand.u32 %v1967, 4294901760
    %1969 = vmatpush1.msra.mxu0 %v1968
    %1970 = vmatprep.subr.mxu0 0.0
    %1971 = vmatpush2.msra.mxu0 0.0
    %1972 = vmatprep.subr.mxu0 0.0
    %1973 = vmatpush2.msra.mxu0 0.0
    %1974 = vmatprep.subr.mxu0 0.0
    %1975 = vmatpush2.msra.mxu0 0.0
    %1976 = vmatprep.subr.mxu0 0.0
    %1977 = vmatpush2.msra.mxu0 0.0
    %1978 = vmatprep.subr.mxu0 0.0
    %1979 = vmatpush2.msra.mxu0 0.0
    %1980 = vmatprep.subr.mxu0 0.0
    %1981 = vmatpush2.msra.mxu0 0.0
    %1982 = vmatprep.subr.mxu0 0.0
    %1983 = vmatpush2.msra.mxu0 0.0
    %1984 = vmatprep.subr.mxu0 0.0
    %1985 = vmatpush2.msra.mxu0 0.0
    %1986 = vmatprep.subr.mxu0 0.0
    %1987 = vmatpush2.msra.mxu0 0.0
    %1988 = vmatprep.subr.mxu0 0.0
    %1989 = vmatpush2.msra.mxu0 0.0
    %1990 = vmatprep.subr.mxu0 0.0
    %1991 = vmatpush2.msra.mxu0 0.0
    %1992 = vmatprep.subr.mxu0 0.0
    %1993 = vmatpush2.msra.mxu0 0.0
    %1994 = vmatprep.subr.mxu0 0.0
    %1995 = vmatpush2.msra.mxu0 0.0
    %1996 = vmatprep.subr.mxu0 0.0
    %1997 = vmatpush2.msra.mxu0 0.0
    %1998 = vmatprep.subr.mxu0 0.0
    %1999 = vmatpush2.msra.mxu0 0.0
    %2000 = vmatprep.subr.mxu0 0.0
    %2001 = vmatpush2.msra.mxu0 0.0
    %2002 = vmatprep.mubr.f32.mxu0 0.0
    %v2003 = vand.u32 %v1450, 4294901760
    %2004 = vmatmul.mubr.f32.gmra.mxu0 %v2003
    %v2005 = vpop.f32.mrf.mxu0
    %v2006 = vadd.f32 %v1887, %v2005
    %v2007 = vpop.f32.mrf.mxu0
    %2008 = vdwg.mxu0
    %2009 = vmatprep.subr.mxu0 0.0
    %v2010 = vand.u32 %v63, 4294901760
    %2011 = vmatpush1.msra.mxu0 %v2010
    %2012 = vmatprep.subr.mxu0 0.0
    %v2013 = vand.u32 %v62, 4294901760
    %2014 = vmatpush1.msra.mxu0 %v2013
    %2015 = vmatprep.subr.mxu0 0.0
    %v2016 = vand.u32 %v61, 4294901760
    %2017 = vmatpush1.msra.mxu0 %v2016
    %2018 = vmatprep.subr.mxu0 0.0
    %v2019 = vand.u32 %v60, 4294901760
    %2020 = vmatpush1.msra.mxu0 %v2019
    %2021 = vmatprep.subr.mxu0 0.0
    %v2022 = vand.u32 %v59, 4294901760
    %2023 = vmatpush1.msra.mxu0 %v2022
    %2024 = vmatprep.subr.mxu0 0.0
    %v2025 = vand.u32 %v58, 4294901760
    %2026 = vmatpush1.msra.mxu0 %v2025
    %2027 = vmatprep.subr.mxu0 0.0
    %v2028 = vand.u32 %v57, 4294901760
    %2029 = vmatpush1.msra.mxu0 %v2028
    %2030 = vmatprep.subr.mxu0 0.0
    %v2031 = vand.u32 %v56, 4294901760
    %2032 = vmatpush1.msra.mxu0 %v2031
    %2033 = vmatprep.subr.mxu0 0.0
    %v2034 = vand.u32 %v55, 4294901760
    %2035 = vmatpush1.msra.mxu0 %v2034
    %2036 = vmatprep.subr.mxu0 0.0
    %v2037 = vand.u32 %v54, 4294901760
    %2038 = vmatpush1.msra.mxu0 %v2037
    %2039 = vmatprep.subr.mxu0 0.0
    %v2040 = vand.u32 %v53, 4294901760
    %2041 = vmatpush1.msra.mxu0 %v2040
    %2042 = vmatprep.subr.mxu0 0.0
    %v2043 = vand.u32 %v52, 4294901760
    %2044 = vmatpush1.msra.mxu0 %v2043
    %2045 = vmatprep.subr.mxu0 0.0
    %v2046 = vand.u32 %v51, 4294901760
    %2047 = vmatpush1.msra.mxu0 %v2046
    %2048 = vmatprep.subr.mxu0 0.0
    %v2049 = vand.u32 %v50, 4294901760
    %2050 = vmatpush1.msra.mxu0 %v2049
    %2051 = vmatprep.subr.mxu0 0.0
    %v2052 = vand.u32 %v49, 4294901760
    %2053 = vmatpush1.msra.mxu0 %v2052
    %2054 = vmatprep.subr.mxu0 0.0
    %v2055 = vand.u32 %v48, 4294901760
    %2056 = vmatpush1.msra.mxu0 %v2055
    %2057 = vmatprep.subr.mxu0 0.0
    %2058 = vmatpush2.msra.mxu0 0.0
    %2059 = vmatprep.subr.mxu0 0.0
    %2060 = vmatpush2.msra.mxu0 0.0
    %2061 = vmatprep.subr.mxu0 0.0
    %2062 = vmatpush2.msra.mxu0 0.0
    %2063 = vmatprep.subr.mxu0 0.0
    %2064 = vmatpush2.msra.mxu0 0.0
    %2065 = vmatprep.subr.mxu0 0.0
    %2066 = vmatpush2.msra.mxu0 0.0
    %2067 = vmatprep.subr.mxu0 0.0
    %2068 = vmatpush2.msra.mxu0 0.0
    %2069 = vmatprep.subr.mxu0 0.0
    %2070 = vmatpush2.msra.mxu0 0.0
    %2071 = vmatprep.subr.mxu0 0.0
    %2072 = vmatpush2.msra.mxu0 0.0
    %2073 = vmatprep.subr.mxu0 0.0
    %2074 = vmatpush2.msra.mxu0 0.0
    %2075 = vmatprep.subr.mxu0 0.0
    %2076 = vmatpush2.msra.mxu0 0.0
    %2077 = vmatprep.subr.mxu0 0.0
    %2078 = vmatpush2.msra.mxu0 0.0
    %2079 = vmatprep.subr.mxu0 0.0
    %2080 = vmatpush2.msra.mxu0 0.0
    %2081 = vmatprep.subr.mxu0 0.0
    %2082 = vmatpush2.msra.mxu0 0.0
    %2083 = vmatprep.subr.mxu0 0.0
    %2084 = vmatpush2.msra.mxu0 0.0
    %2085 = vmatprep.subr.mxu0 0.0
    %2086 = vmatpush2.msra.mxu0 0.0
    %2087 = vmatprep.subr.mxu0 0.0
    %2088 = vmatpush2.msra.mxu0 0.0
    %2089 = vmatprep.mubr.f32.mxu0 0.0
    %v2090 = vand.u32 %v1450, 4294901760
    %2091 = vmatmul.mubr.f32.gmra.mxu0 %v2090
    %v2092 = vpop.f32.mrf.mxu0
    %v2093 = vadd.f32 %v2006, %v2092
    %v2094 = vpop.f32.mrf.mxu0
    %2095 = vdwg.mxu0
    %2097 = vset.pattern.permute.xlu0 1
    %2098 = vperm.xlu0 %2097, %v1435
    %v2099 = vpop.permute.xlu0 %2098
    %v2101 = vmul.f32 %v2099, %v1400
    %v2102 = vadd.f32 %v2093, %v2101
    %v2103 = vadd.f32 %v2102, %v1406
    %2104 = vadd.xlane.f32.xlu0 %v2103
    %v2105 = vpop.xlane.xlu0 %2104
    %v2106 = vmul.f32 %v2105, %v1410
    %v2107 = vsub.f32 %v2103, %v2106
    %v2108 = vmul.f32 %v2107, %v2107
    %2109 = vadd.xlane.f32.xlu0 %v2108
    %v2110 = vpop.xlane.xlu0 %2109
    %v2111 = vmul.f32 %v2110, %v1410
    %v2112 = vadd.f32 %v2111, 1e-05
    %v2113 = vrsqrt.pop %v2112
    %v2114 = vmul.f32 %v2107, %v2113
    %v2115 = vmul.f32 %v2114, %v1423
    %v2116 = vadd.f32 %v2115, %v1428
    %v2117 = vadd.f32 %v2116, 1e-08
    %s2118 = scalar_lea.vmem [#allocation7], 8
    %2119 = vst [vmem:[%s2118] sm:$0xff] %v2117
    // Predicated region
    $region30: #{tpu_custom_call.1} parent=1 // pred_check
      _
    $region31: #{tpu_custom_call.1} parent=1 // pred_check_branch
      %2121 = sbr.rel (0) target = $region33
    $region32: #{tpu_custom_call.1} parent=1 // pred_region
      %s2123 = ssub.s32 256, 256
      %2124 = vsyncadd [#allocation4], %s2123
      %s2125 = sshll.u32 [#allocation7], 4
      %s2126 = int_to_ptr.vmem [resolvable:$true] %s2125
      %2131 = dma.vmem_to_hbm [thread:$0]  %s2126, 256, %s5, [#allocation4], 128, 128, 8
    $region33: #{tpu_custom_call.1} parent=1 // pred_fallthru
      _
    // Predicated region
    $region34: #{tpu_custom_call.1} parent=1 // pred_check
      _
    $region35: #{tpu_custom_call.1} parent=1 // pred_check_branch
      %2133 = sbr.rel (0) target = $region37
    $region36: #{tpu_custom_call.1} parent=1 // pred_region
      %2134 = dma.done [#allocation4], 256
    $region37: #{tpu_custom_call.1} parent=1 // pred_fallthru
      _
    %2135 = vsyncpa [#allocation3], 1
    %2136 = vsyncpa [#allocation6], 1
    %2137 = vsyncpa [#allocation4], 1

</llo_original>
